<compile_context>
chip_gen: v5e
topology: v5e:2x2
jax: 0.10.0
libtpu: 0.0.40
codegen_flags: <defaults>
</compile_context>

<pallas_src>
import functools

import jax
import jax.numpy as jnp
from jax.experimental import pallas as pl
from jax.experimental.pallas import tpu as pltpu

LAYER1_NODE = 8192
_ROW_ALIGN = 16  # bf16 sublane tile (also a multiple of the f32 tile of 8)


def _round_up(n, m):
    return (n + m - 1) // m * m


def _nbytes(a):
    return a.size * a.dtype.itemsize


def _mlp_kernel(x_ref, w_ref, b_ref, o_ref, *, y_dim, w2_row0, code_length):
    """Fused fc1 -> ReLU -> fc2 -> tanh; single block, all operands in VMEM."""
    w1 = w_ref[0:y_dim, :]                             # (y_dim, H)
    w2t = w_ref[w2_row0:w2_row0 + code_length, :]      # (C, H)  == W2^T (tile-aligned row start)
    b1 = b_ref[0:1, :]                                 # (1, H) f32
    b2 = b_ref[1:2, 0:code_length]                     # (1, C) f32

    # fc1 + bias + ReLU — hidden slab (B, H) lives only in VMEM/vregs.
    h = jnp.dot(x_ref[...].astype(w_ref.dtype), w1,
                preferred_element_type=jnp.float32)
    h = jnp.maximum(h + b1, 0.0)

    # fc2: contract along the lane dim against W2^T, then bias + tanh,
    # written straight to the output block (no scratch accumulator).
    out = jnp.einsum('bh,ch->bc', h.astype(w_ref.dtype), w2t,
                     preferred_element_type=jnp.float32)
    o_ref[...] = jnp.tanh(out + b2).astype(o_ref.dtype)


def pack_params(w1, b1, w2, b2, *, weights_dtype=jnp.bfloat16):
    """One-time parameter packing — do NOT call per forward pass.

    Returns (wslab, bslab, meta):
      wslab: (w2_row0 + C, H) `weights_dtype`; rows [0:y_dim] = W1,
             rows [w2_row0:] = W2^T  (w2_row0 = y_dim rounded up to a tile boundary).
      bslab: (2, H) f32; row 0 = b1, row 1 = b2 zero-padded to H.
    """
    y_dim, H = w1.shape
    H2, C = w2.shape
    assert H == LAYER1_NODE and H2 == H
    assert b1.shape == (H,) and b2.shape == (C,)
    assert C <= H

    w2_row0 = _round_up(y_dim, _ROW_ALIGN)
    rows = w2_row0 + C
    wslab = jnp.zeros((rows, H), dtype=weights_dtype)
    wslab = wslab.at[:y_dim, :].set(w1.astype(weights_dtype))
    wslab = wslab.at[w2_row0:rows, :].set(w2.T.astype(weights_dtype))

    bslab = jnp.zeros((2, H), dtype=jnp.float32)
    bslab = bslab.at[0, :].set(b1.astype(jnp.float32))
    bslab = bslab.at[1, :C].set(b2.astype(jnp.float32))

    meta = dict(y_dim=int(y_dim), hidden=int(H), code_length=int(C),
                w2_row0=int(w2_row0))
    return wslab, bslab, meta


def net_forward(x, wslab, bslab, meta):
    """x: (B, y_dim) f32 -> squeeze(tanh(fc2(relu(fc1(x))))), f32."""
    B, y_dim = x.shape
    assert y_dim == meta["y_dim"]
    H = meta["hidden"]
    C = meta["code_length"]

    out_bytes = B * C * 4
    io_bytes = _nbytes(x) + _nbytes(wslab) + _nbytes(bslab) + out_bytes

    # Rough VMEM footprint (no grid => no double-buffering): operands + f32 hidden slab.
    vmem_bytes = io_bytes + B * H * 4
    compiler_params = None
    if vmem_bytes > 16 * 1024 * 1024:
        # Batch-scaling guard: raise the scoped-VMEM limit for medium batches.
        # Once B pushes toward physical VMEM (64 MiB on v7x), re-introduce an
        # H-chunked grid (reduction axis "arbitrary") instead of growing this.
        compiler_params = pltpu.CompilerParams(
            vmem_limit_bytes=min(int(vmem_bytes * 1.25) + (1 << 20),
                                 100 * 1024 * 1024))

    kernel = functools.partial(_mlp_kernel, y_dim=y_dim,
                               w2_row0=meta["w2_row0"], code_length=C)
    vmem = pltpu.MemorySpace.VMEM
    out = pl.pallas_call(
        kernel,
        out_shape=jax.ShapeDtypeStruct((B, C), jnp.float32),
        in_specs=[
            pl.BlockSpec(memory_space=vmem),  # x
            pl.BlockSpec(memory_space=vmem),  # packed weights (W1 | W2^T)
            pl.BlockSpec(memory_space=vmem),  # packed biases (b1 | b2)
        ],
        out_specs=pl.BlockSpec(memory_space=vmem),
        cost_estimate=pl.CostEstimate(
            flops=2 * B * H * (y_dim + C),
            transcendentals=B * C,
            bytes_accessed=io_bytes),
        compiler_params=compiler_params,
    )(x, wslab, bslab)

    # torch's x.squeeze(): drop all size-1 dims (no-op for B>1, C>1).
    return jnp.squeeze(out)


def init_params(key, y_dim, code_length):
    """Deterministic init mirroring nn.Linear's U(-1/sqrt(fan_in), 1/sqrt(fan_in))."""
    k1, k2, k3, k4 = jax.random.split(key, 4)
    lim1 = 1.0 / jnp.sqrt(jnp.float32(y_dim))
    lim2 = 1.0 / jnp.sqrt(jnp.float32(LAYER1_NODE))
    w1 = jax.random.uniform(k1, (y_dim, LAYER1_NODE), jnp.float32, -lim1, lim1)
    b1 = jax.random.uniform(k2, (LAYER1_NODE,), jnp.float32, -lim1, lim1)
    w2 = jax.random.uniform(k3, (LAYER1_NODE, code_length), jnp.float32, -lim2, lim2)
    b2 = jax.random.uniform(k4, (code_length,), jnp.float32, -lim2, lim2)
    return w1, b1, w2, b2


if __name__ == "__main__":
    y_dim = 32
    code_length = 16
    batch = 8

    key = jax.random.PRNGKey(0)
    kx, kp = jax.random.split(key)
    x = jax.random.normal(kx, (batch, y_dim), jnp.float32)
    w1, b1, w2, b2 = init_params(kp, y_dim, code_length)

    # Full-precision reference in plain JAX.
    ref = jnp.squeeze(jnp.tanh(jnp.maximum(x @ w1 + b1, 0.0) @ w2 + b2))

    # One-time packing: persisted bf16 weight slab + f32 bias slab.  The per-call
    # hot path (fwd) runs only the pallas_call on pre-packed device arrays.
    wslab, bslab, meta = pack_params(w1, b1, w2, b2, weights_dtype=jnp.bfloat16)

    @jax.jit
    def fwd(xx):
        return net_forward(xx, wslab, bslab, meta)

    out_bf16 = jax.block_until_ready(fwd(x))
    assert out_bf16.shape == ref.shape
    # Dominant error term is the bf16 activation cast before the K=8192 fc2 contraction.
    assert jnp.allclose(out_bf16, ref, atol=3e-2, rtol=3e-2)

    # f32-weight path to validate kernel logic tightly (tolerance left with a little
    # slack for TPU f32-matmul decomposition differences between Mosaic and XLA).
    wslab32, bslab32, meta32 = pack_params(w1, b1, w2, b2, weights_dtype=jnp.float32)
    out_f32 = jax.block_until_ready(net_forward(x, wslab32, bslab32, meta32))
    assert out_f32.shape == ref.shape
    assert jnp.allclose(out_f32, ref, atol=1e-4, rtol=1e-4)

    print("KERNEL_OK")
</pallas_src>

<mosaic_0001>
module attributes {stable_mosaic.version = 11 : i64} {
  func.func @_mlp_kernel(%arg0: memref<8x32xf32, #tpu.memory_space<vmem>>, %arg1: memref<48x8192xbf16, #tpu.memory_space<vmem>>, %arg2: memref<2x8192xf32, #tpu.memory_space<vmem>>, %arg3: memref<8x16xf32, #tpu.memory_space<vmem>>) attributes {dimension_semantics = [], scalar_prefetch = 0 : i64, scratch_operands = 0 : i64, tpu.core_type = #tpu.core_type<tc>} {
    %c0 = arith.constant 0 : index
    %c0_0 = arith.constant 0 : index
    %0 = vector.load %arg1[%c0, %c0_0] : memref<48x8192xbf16, #tpu.memory_space<vmem>>, vector<32x8192xbf16>
    %c32 = arith.constant 32 : index
    %c0_1 = arith.constant 0 : index
    %1 = vector.load %arg1[%c32, %c0_1] : memref<48x8192xbf16, #tpu.memory_space<vmem>>, vector<16x8192xbf16>
    %c0_2 = arith.constant 0 : index
    %c0_3 = arith.constant 0 : index
    %2 = vector.load %arg2[%c0_2, %c0_3] : memref<2x8192xf32, #tpu.memory_space<vmem>>, vector<1x8192xf32>
    %c1 = arith.constant 1 : index
    %c0_4 = arith.constant 0 : index
    %3 = vector.load %arg2[%c1, %c0_4] : memref<2x8192xf32, #tpu.memory_space<vmem>>, vector<1x16xf32>
    %c0_5 = arith.constant 0 : index
    %c0_6 = arith.constant 0 : index
    %4 = vector.load %arg0[%c0_5, %c0_6] : memref<8x32xf32, #tpu.memory_space<vmem>>, vector<8x32xf32>
    %5 = arith.truncf %4 : vector<8x32xf32> to vector<8x32xbf16>
    %cst = arith.constant dense<0.000000e+00> : vector<8x8192xf32>
    %6 = tpu.matmul %5, %0, %cst {dimension_numbers = #tpu.dot_dimension_numbers<[1], [0], [0], [1], [0, 0, 1, 1], [], []>} : vector<8x32xbf16>, vector<32x8192xbf16>, vector<8x8192xf32> -> vector<8x8192xf32>
    %7 = vector.broadcast %2 : vector<1x8192xf32> to vector<8x8192xf32>
    %8 = arith.addf %6, %7 : vector<8x8192xf32>
    %cst_7 = arith.constant 0.000000e+00 : f32
    %9 = vector.broadcast %cst_7 : f32 to vector<8x8192xf32>
    %10 = arith.maximumf %8, %9 : vector<8x8192xf32>
    %11 = arith.truncf %10 : vector<8x8192xf32> to vector<8x8192xbf16>
    "tpu.trace_start"() <{level = 10 : i32, message = "bh,ch->bc"}> : () -> ()
    %cst_8 = arith.constant dense<0.000000e+00> : vector<8x16xf32>
    %12 = tpu.matmul %11, %1, %cst_8 {dimension_numbers = #tpu.dot_dimension_numbers<[1], [1], [0], [0], [0, 0, 1, 0], [], []>} : vector<8x8192xbf16>, vector<16x8192xbf16>, vector<8x16xf32> -> vector<8x16xf32>
    "tpu.trace_stop"() : () -> ()
    %13 = vector.broadcast %3 : vector<1x16xf32> to vector<8x16xf32>
    %14 = arith.addf %12, %13 : vector<8x16xf32>
    %15 = math.tanh %14 : vector<8x16xf32>
    %c0_9 = arith.constant 0 : index
    %c0_10 = arith.constant 0 : index
    %16 = vector.load %arg3[%c0_9, %c0_10] : memref<8x16xf32, #tpu.memory_space<vmem>>, vector<8x16xf32>
    tpu.vector_store %arg3[%c0_9, %c0_10], %15 {strides = array<i32>} : memref<8x16xf32, #tpu.memory_space<vmem>>, vector<8x16xf32>,
    return
  }
}

</mosaic_0001>

<llo_original>
// kernel: fwd.1
$region0: #{fwd.1}
  #allocation0 [shape = 'u32[]', space=smem, size = 0x4, offset = 0x4, fixed_abs, tag = 'smem constant byte address 0x4 - core index']
  #allocation1 [shape = 'u32[72,128]{1,0:T(1,128)}', space=vmem, size = 0x9000, scoped, tag = 'internal scratch']
  %s0 = inlined_call_operand.hbm [shape: f32[8,32], index: 0, kind: input, shape index: {}]
  %s1 = inlined_call_operand.hbm [shape: bf16[48,8192], index: 1, kind: input, shape index: {}]
  %s2 = inlined_call_operand.hbm [shape: f32[2,8192], index: 2, kind: input, shape index: {}]
  %s3 = inlined_call_operand.hbm [shape: f32[8,16], index: 3, kind: output, shape index: {}]
  %s4 = sld [smem:[#allocation0]]
  $region34: #{fwd.1} parent=0
    _
  %s6 = ssub.s32 1, %s4
  %s7 = scalar_select 0, %s6, %s4
  $region1: #{fwd.1} parent=0
    #allocation2 [shape = 'u8[4096]{0}', space=vmem, size = 0x1000, scoped, tag = 'input window, operand 0, single buffered']
    #allocation3 [shape = 's32[1]{0}', space=sflag, size = 0x4, scoped, tag = 'scoped memory for fwd.1']
    #allocation4 [shape = 's32[1]{0}', space=sflag, size = 0x4, scoped, tag = 'scoped memory for fwd.1']
    #allocation5 [shape = 'u8[786432]{0}', space=vmem, size = 0xc0000, scoped, tag = 'input window, operand 1, single buffered']
    #allocation6 [shape = 's32[1]{0}', space=sflag, size = 0x4, scoped, tag = 'scoped memory for fwd.1']
    #allocation7 [shape = 'u8[65536]{0}', space=vmem, size = 0x10000, scoped, tag = 'input window, operand 2, single buffered']
    #allocation8 [shape = 'u8[4096]{0}', space=vmem, size = 0x1000, scoped, tag = 'output window, operand 0, single buffered']
    %8 = vsyncpa [#allocation3], 0
    %9 = vsyncpa [#allocation6], 0
    %10 = vsyncpa [#allocation4], 0
    // Predicated region
    $region2: #{fwd.1} parent=1 // pred_check
      _
    $region3: #{fwd.1} parent=1 // pred_check_branch
      %12 = sbr.rel (0) target = $region5
    $region4: #{fwd.1} parent=1 // pred_region
      %14 = vsyncadd [#allocation3], 0
      %s16 = sshll.u32 %s0, 4
      %s17 = int_to_ptr.hbm [resolvable:$true] %s16
      %s18 = sshll.u32 [#allocation2], 4
      %s19 = int_to_ptr.vmem [resolvable:$true] %s18
      %21 = dma.hbm_to_vmem [thread:$0]  %s17, 128, %s19, [#allocation3]
    $region5: #{fwd.1} parent=1 // pred_fallthru
      _
    // Predicated region
    $region6: #{fwd.1} parent=1 // pred_check
      _
    $region7: #{fwd.1} parent=1 // pred_check_branch
      %23 = sbr.rel (0) target = $region9
    $region8: #{fwd.1} parent=1 // pred_region
      %25 = vsyncadd [#allocation6], 0
      %s26 = sshll.u32 %s1, 4
      %s27 = int_to_ptr.hbm [resolvable:$true] %s26
      %s28 = sshll.u32 [#allocation5], 4
      %s29 = int_to_ptr.vmem [resolvable:$true] %s28
      %34 = dma.hbm_to_vmem [thread:$0]  %s27, 24576, %s29, [#allocation6], 4096, 4096, 256
    $region9: #{fwd.1} parent=1 // pred_fallthru
      _
    // Predicated region
    $region10: #{fwd.1} parent=1 // pred_check
      _
    $region11: #{fwd.1} parent=1 // pred_check_branch
      %36 = sbr.rel (0) target = $region13
    $region12: #{fwd.1} parent=1 // pred_region
      %38 = vsyncadd [#allocation6], 0
      %s40 = sshll.u32 %s2, 4
      %s41 = int_to_ptr.hbm [resolvable:$true] %s40
      %s42 = sshll.u32 [#allocation7], 4
      %s43 = int_to_ptr.vmem [resolvable:$true] %s42
      %45 = dma.hbm_to_vmem [thread:$0]  %s41, 2048, %s43, [#allocation6]
    $region13: #{fwd.1} parent=1 // pred_fallthru
      _
    // Predicated region
    $region14: #{fwd.1} parent=1 // pred_check
      _
    $region15: #{fwd.1} parent=1 // pred_check_branch
      %47 = sbr.rel (0) target = $region17
    $region16: #{fwd.1} parent=1 // pred_region
      %49 = dma.done [#allocation3], 128
    $region17: #{fwd.1} parent=1 // pred_fallthru
      _
    // Predicated region
    $region18: #{fwd.1} parent=1 // pred_check
      _
    $region19: #{fwd.1} parent=1 // pred_check_branch
      %51 = sbr.rel (0) target = $region21
    $region20: #{fwd.1} parent=1 // pred_region
      %53 = dma.done [#allocation6], 24576
    $region21: #{fwd.1} parent=1 // pred_fallthru
      _
    // Predicated region
    $region22: #{fwd.1} parent=1 // pred_check
      _
    $region23: #{fwd.1} parent=1 // pred_check_branch
      %55 = sbr.rel (0) target = $region25
    $region24: #{fwd.1} parent=1 // pred_region
      %57 = dma.done [#allocation6], 2048
    $region25: #{fwd.1} parent=1 // pred_fallthru
      _
    %v59 = vld [vmem:[#allocation5] sm:$0xff]
    %v60 = vld [vmem:[#allocation5 + $0x8] sm:$0xff]
    %v61 = vld [vmem:[#allocation5 + $0x10] sm:$0xff]
    %v62 = vld [vmem:[#allocation5 + $0x18] sm:$0xff]
    %v63 = vld [vmem:[#allocation5 + $0x20] sm:$0xff]
    %v64 = vld [vmem:[#allocation5 + $0x28] sm:$0xff]
    %v65 = vld [vmem:[#allocation5 + $0x30] sm:$0xff]
    %v66 = vld [vmem:[#allocation5 + $0x38] sm:$0xff]
    %v67 = vld [vmem:[#allocation5 + $0x40] sm:$0xff]
    %v68 = vld [vmem:[#allocation5 + $0x48] sm:$0xff]
    %v69 = vld [vmem:[#allocation5 + $0x50] sm:$0xff]
    %v70 = vld [vmem:[#allocation5 + $0x58] sm:$0xff]
    %v71 = vld [vmem:[#allocation5 + $0x60] sm:$0xff]
    %v72 = vld [vmem:[#allocation5 + $0x68] sm:$0xff]
    %v73 = vld [vmem:[#allocation5 + $0x70] sm:$0xff]
    %v74 = vld [vmem:[#allocation5 + $0x78] sm:$0xff]
    %v75 = vld [vmem:[#allocation5 + $0x80] sm:$0xff]
    %v76 = vld [vmem:[#allocation5 + $0x88] sm:$0xff]
    %v77 = vld [vmem:[#allocation5 + $0x90] sm:$0xff]
    %v78 = vld [vmem:[#allocation5 + $0x98] sm:$0xff]
    %v79 = vld [vmem:[#allocation5 + $0xa0] sm:$0xff]
    %v80 = vld [vmem:[#allocation5 + $0xa8] sm:$0xff]
    %v81 = vld [vmem:[#allocation5 + $0xb0] sm:$0xff]
    %v82 = vld [vmem:[#allocation5 + $0xb8] sm:$0xff]
    %v83 = vld [vmem:[#allocation5 + $0xc0] sm:$0xff]
    %v84 = vld [vmem:[#allocation5 + $0xc8] sm:$0xff]
    %v85 = vld [vmem:[#allocation5 + $0xd0] sm:$0xff]
    %v86 = vld [vmem:[#allocation5 + $0xd8] sm:$0xff]
    %v87 = vld [vmem:[#allocation5 + $0xe0] sm:$0xff]
    %v88 = vld [vmem:[#allocation5 + $0xe8] sm:$0xff]
    %v89 = vld [vmem:[#allocation5 + $0xf0] sm:$0xff]
    %v90 = vld [vmem:[#allocation5 + $0xf8] sm:$0xff]
    %v91 = vld [vmem:[#allocation5 + $0x100] sm:$0xff]
    %v92 = vld [vmem:[#allocation5 + $0x108] sm:$0xff]
    %v93 = vld [vmem:[#allocation5 + $0x110] sm:$0xff]
    %v94 = vld [vmem:[#allocation5 + $0x118] sm:$0xff]
    %v95 = vld [vmem:[#allocation5 + $0x120] sm:$0xff]
    %v96 = vld [vmem:[#allocation5 + $0x128] sm:$0xff]
    %v97 = vld [vmem:[#allocation5 + $0x130] sm:$0xff]
    %v98 = vld [vmem:[#allocation5 + $0x138] sm:$0xff]
    %v99 = vld [vmem:[#allocation5 + $0x140] sm:$0xff]
    %v100 = vld [vmem:[#allocation5 + $0x148] sm:$0xff]
    %v101 = vld [vmem:[#allocation5 + $0x150] sm:$0xff]
    %v102 = vld [vmem:[#allocation5 + $0x158] sm:$0xff]
    %v103 = vld [vmem:[#allocation5 + $0x160] sm:$0xff]
    %v104 = vld [vmem:[#allocation5 + $0x168] sm:$0xff]
    %v105 = vld [vmem:[#allocation5 + $0x170] sm:$0xff]
    %v106 = vld [vmem:[#allocation5 + $0x178] sm:$0xff]
    %v107 = vld [vmem:[#allocation5 + $0x180] sm:$0xff]
    %v108 = vld [vmem:[#allocation5 + $0x188] sm:$0xff]
    %v109 = vld [vmem:[#allocation5 + $0x190] sm:$0xff]
    %v110 = vld [vmem:[#allocation5 + $0x198] sm:$0xff]
    %v111 = vld [vmem:[#allocation5 + $0x1a0] sm:$0xff]
    %v112 = vld [vmem:[#allocation5 + $0x1a8] sm:$0xff]
    %v113 = vld [vmem:[#allocation5 + $0x1b0] sm:$0xff]
    %v114 = vld [vmem:[#allocation5 + $0x1b8] sm:$0xff]
    %v115 = vld [vmem:[#allocation5 + $0x1c0] sm:$0xff]
    %v116 = vld [vmem:[#allocation5 + $0x1c8] sm:$0xff]
    %v117 = vld [vmem:[#allocation5 + $0x1d0] sm:$0xff]
    %v118 = vld [vmem:[#allocation5 + $0x1d8] sm:$0xff]
    %v119 = vld [vmem:[#allocation5 + $0x1e0] sm:$0xff]
    %v120 = vld [vmem:[#allocation5 + $0x1e8] sm:$0xff]
    %v121 = vld [vmem:[#allocation5 + $0x1f0] sm:$0xff]
    %v122 = vld [vmem:[#allocation5 + $0x1f8] sm:$0xff]
    %v123 = vld [vmem:[#allocation5 + $0x200] sm:$0xff]
    %v124 = vld [vmem:[#allocation5 + $0x208] sm:$0xff]
    %v125 = vld [vmem:[#allocation5 + $0x210] sm:$0xff]
    %v126 = vld [vmem:[#allocation5 + $0x218] sm:$0xff]
    %v127 = vld [vmem:[#allocation5 + $0x220] sm:$0xff]
    %v128 = vld [vmem:[#allocation5 + $0x228] sm:$0xff]
    %v129 = vld [vmem:[#allocation5 + $0x230] sm:$0xff]
    %v130 = vld [vmem:[#allocation5 + $0x238] sm:$0xff]
    %v131 = vld [vmem:[#allocation5 + $0x240] sm:$0xff]
    %v132 = vld [vmem:[#allocation5 + $0x248] sm:$0xff]
    %v133 = vld [vmem:[#allocation5 + $0x250] sm:$0xff]
    %v134 = vld [vmem:[#allocation5 + $0x258] sm:$0xff]
    %v135 = vld [vmem:[#allocation5 + $0x260] sm:$0xff]
    %v136 = vld [vmem:[#allocation5 + $0x268] sm:$0xff]
    %v137 = vld [vmem:[#allocation5 + $0x270] sm:$0xff]
    %v138 = vld [vmem:[#allocation5 + $0x278] sm:$0xff]
    %v139 = vld [vmem:[#allocation5 + $0x280] sm:$0xff]
    %v140 = vld [vmem:[#allocation5 + $0x288] sm:$0xff]
    %v141 = vld [vmem:[#allocation5 + $0x290] sm:$0xff]
    %v142 = vld [vmem:[#allocation5 + $0x298] sm:$0xff]
    %v143 = vld [vmem:[#allocation5 + $0x2a0] sm:$0xff]
    %v144 = vld [vmem:[#allocation5 + $0x2a8] sm:$0xff]
    %v145 = vld [vmem:[#allocation5 + $0x2b0] sm:$0xff]
    %v146 = vld [vmem:[#allocation5 + $0x2b8] sm:$0xff]
    %v147 = vld [vmem:[#allocation5 + $0x2c0] sm:$0xff]
    %v148 = vld [vmem:[#allocation5 + $0x2c8] sm:$0xff]
    %v149 = vld [vmem:[#allocation5 + $0x2d0] sm:$0xff]
    %v150 = vld [vmem:[#allocation5 + $0x2d8] sm:$0xff]
    %v151 = vld [vmem:[#allocation5 + $0x2e0] sm:$0xff]
    %v152 = vld [vmem:[#allocation5 + $0x2e8] sm:$0xff]
    %v153 = vld [vmem:[#allocation5 + $0x2f0] sm:$0xff]
    %v154 = vld [vmem:[#allocation5 + $0x2f8] sm:$0xff]
    %v155 = vld [vmem:[#allocation5 + $0x300] sm:$0xff]
    %v156 = vld [vmem:[#allocation5 + $0x308] sm:$0xff]
    %v157 = vld [vmem:[#allocation5 + $0x310] sm:$0xff]
    %v158 = vld [vmem:[#allocation5 + $0x318] sm:$0xff]
    %v159 = vld [vmem:[#allocation5 + $0x320] sm:$0xff]
    %v160 = vld [vmem:[#allocation5 + $0x328] sm:$0xff]
    %v161 = vld [vmem:[#allocation5 + $0x330] sm:$0xff]
    %v162 = vld [vmem:[#allocation5 + $0x338] sm:$0xff]
    %v163 = vld [vmem:[#allocation5 + $0x340] sm:$0xff]
    %v164 = vld [vmem:[#allocation5 + $0x348] sm:$0xff]
    %v165 = vld [vmem:[#allocation5 + $0x350] sm:$0xff]
    %v166 = vld [vmem:[#allocation5 + $0x358] sm:$0xff]
    %v167 = vld [vmem:[#allocation5 + $0x360] sm:$0xff]
    %v168 = vld [vmem:[#allocation5 + $0x368] sm:$0xff]
    %v169 = vld [vmem:[#allocation5 + $0x370] sm:$0xff]
    %v170 = vld [vmem:[#allocation5 + $0x378] sm:$0xff]
    %v171 = vld [vmem:[#allocation5 + $0x380] sm:$0xff]
    %v172 = vld [vmem:[#allocation5 + $0x388] sm:$0xff]
    %v173 = vld [vmem:[#allocation5 + $0x390] sm:$0xff]
    %v174 = vld [vmem:[#allocation5 + $0x398] sm:$0xff]
    %v175 = vld [vmem:[#allocation5 + $0x3a0] sm:$0xff]
    %v176 = vld [vmem:[#allocation5 + $0x3a8] sm:$0xff]
    %v177 = vld [vmem:[#allocation5 + $0x3b0] sm:$0xff]
    %v178 = vld [vmem:[#allocation5 + $0x3b8] sm:$0xff]
    %v179 = vld [vmem:[#allocation5 + $0x3c0] sm:$0xff]
    %v180 = vld [vmem:[#allocation5 + $0x3c8] sm:$0xff]
    %v181 = vld [vmem:[#allocation5 + $0x3d0] sm:$0xff]
    %v182 = vld [vmem:[#allocation5 + $0x3d8] sm:$0xff]
    %v183 = vld [vmem:[#allocation5 + $0x3e0] sm:$0xff]
    %v184 = vld [vmem:[#allocation5 + $0x3e8] sm:$0xff]
    %v185 = vld [vmem:[#allocation5 + $0x3f0] sm:$0xff]
    %v186 = vld [vmem:[#allocation5 + $0x3f8] sm:$0xff]
    %v187 = vld [vmem:[#allocation5 + $0x400] sm:$0xff]
    %v188 = vld [vmem:[#allocation5 + $0x408] sm:$0xff]
    %v189 = vld [vmem:[#allocation5 + $0x410] sm:$0xff]
    %v190 = vld [vmem:[#allocation5 + $0x418] sm:$0xff]
    %v191 = vld [vmem:[#allocation5 + $0x420] sm:$0xff]
    %v192 = vld [vmem:[#allocation5 + $0x428] sm:$0xff]
    %v193 = vld [vmem:[#allocation5 + $0x430] sm:$0xff]
    %v194 = vld [vmem:[#allocation5 + $0x438] sm:$0xff]
    %v195 = vld [vmem:[#allocation5 + $0x440] sm:$0xff]
    %v196 = vld [vmem:[#allocation5 + $0x448] sm:$0xff]
    %v197 = vld [vmem:[#allocation5 + $0x450] sm:$0xff]
    %v198 = vld [vmem:[#allocation5 + $0x458] sm:$0xff]
    %v199 = vld [vmem:[#allocation5 + $0x460] sm:$0xff]
    %v200 = vld [vmem:[#allocation5 + $0x468] sm:$0xff]
    %v201 = vld [vmem:[#allocation5 + $0x470] sm:$0xff]
    %v202 = vld [vmem:[#allocation5 + $0x478] sm:$0xff]
    %v203 = vld [vmem:[#allocation5 + $0x480] sm:$0xff]
    %v204 = vld [vmem:[#allocation5 + $0x488] sm:$0xff]
    %v205 = vld [vmem:[#allocation5 + $0x490] sm:$0xff]
    %v206 = vld [vmem:[#allocation5 + $0x498] sm:$0xff]
    %v207 = vld [vmem:[#allocation5 + $0x4a0] sm:$0xff]
    %v208 = vld [vmem:[#allocation5 + $0x4a8] sm:$0xff]
    %v209 = vld [vmem:[#allocation5 + $0x4b0] sm:$0xff]
    %v210 = vld [vmem:[#allocation5 + $0x4b8] sm:$0xff]
    %v211 = vld [vmem:[#allocation5 + $0x4c0] sm:$0xff]
    %v212 = vld [vmem:[#allocation5 + $0x4c8] sm:$0xff]
    %v213 = vld [vmem:[#allocation5 + $0x4d0] sm:$0xff]
    %v214 = vld [vmem:[#allocation5 + $0x4d8] sm:$0xff]
    %v215 = vld [vmem:[#allocation5 + $0x4e0] sm:$0xff]
    %v216 = vld [vmem:[#allocation5 + $0x4e8] sm:$0xff]
    %v217 = vld [vmem:[#allocation5 + $0x4f0] sm:$0xff]
    %v218 = vld [vmem:[#allocation5 + $0x4f8] sm:$0xff]
    %v219 = vld [vmem:[#allocation5 + $0x500] sm:$0xff]
    %v220 = vld [vmem:[#allocation5 + $0x508] sm:$0xff]
    %v221 = vld [vmem:[#allocation5 + $0x510] sm:$0xff]
    %v222 = vld [vmem:[#allocation5 + $0x518] sm:$0xff]
    %v223 = vld [vmem:[#allocation5 + $0x520] sm:$0xff]
    %v224 = vld [vmem:[#allocation5 + $0x528] sm:$0xff]
    %v225 = vld [vmem:[#allocation5 + $0x530] sm:$0xff]
    %v226 = vld [vmem:[#allocation5 + $0x538] sm:$0xff]
    %v227 = vld [vmem:[#allocation5 + $0x540] sm:$0xff]
    %v228 = vld [vmem:[#allocation5 + $0x548] sm:$0xff]
    %v229 = vld [vmem:[#allocation5 + $0x550] sm:$0xff]
    %v230 = vld [vmem:[#allocation5 + $0x558] sm:$0xff]
    %v231 = vld [vmem:[#allocation5 + $0x560] sm:$0xff]
    %v232 = vld [vmem:[#allocation5 + $0x568] sm:$0xff]
    %v233 = vld [vmem:[#allocation5 + $0x570] sm:$0xff]
    %v234 = vld [vmem:[#allocation5 + $0x578] sm:$0xff]
    %v235 = vld [vmem:[#allocation5 + $0x580] sm:$0xff]
    %v236 = vld [vmem:[#allocation5 + $0x588] sm:$0xff]
    %v237 = vld [vmem:[#allocation5 + $0x590] sm:$0xff]
    %v238 = vld [vmem:[#allocation5 + $0x598] sm:$0xff]
    %v239 = vld [vmem:[#allocation5 + $0x5a0] sm:$0xff]
    %v240 = vld [vmem:[#allocation5 + $0x5a8] sm:$0xff]
    %v241 = vld [vmem:[#allocation5 + $0x5b0] sm:$0xff]
    %v242 = vld [vmem:[#allocation5 + $0x5b8] sm:$0xff]
    %v243 = vld [vmem:[#allocation5 + $0x5c0] sm:$0xff]
    %v244 = vld [vmem:[#allocation5 + $0x5c8] sm:$0xff]
    %v245 = vld [vmem:[#allocation5 + $0x5d0] sm:$0xff]
    %v246 = vld [vmem:[#allocation5 + $0x5d8] sm:$0xff]
    %v247 = vld [vmem:[#allocation5 + $0x5e0] sm:$0xff]
    %v248 = vld [vmem:[#allocation5 + $0x5e8] sm:$0xff]
    %v249 = vld [vmem:[#allocation5 + $0x5f0] sm:$0xff]
    %v250 = vld [vmem:[#allocation5 + $0x5f8] sm:$0xff]
    %v251 = vld [vmem:[#allocation7] ss:$2 sm:$0xff]
    %s252 = scalar_lea.vmem [#allocation7], 16
    %v253 = vld [vmem:[%s252] ss:$2 sm:$0xff]
    %s254 = scalar_lea.vmem [#allocation7], 32
    %v255 = vld [vmem:[%s254] ss:$2 sm:$0xff]
    %s256 = scalar_lea.vmem [#allocation7], 48
    %v257 = vld [vmem:[%s256] ss:$2 sm:$0xff]
    %s258 = scalar_lea.vmem [#allocation7], 64
    %v259 = vld [vmem:[%s258] ss:$2 sm:$0xff]
    %s260 = scalar_lea.vmem [#allocation7], 80
    %v261 = vld [vmem:[%s260] ss:$2 sm:$0xff]
    %s262 = scalar_lea.vmem [#allocation7], 96
    %v263 = vld [vmem:[%s262] ss:$2 sm:$0xff]
    %s264 = scalar_lea.vmem [#allocation7], 112
    %v265 = vld [vmem:[%s264] ss:$2 sm:$0xff]
    %v266 = vld [vmem:[#allocation7 + $0x1] sm:$0x1]
    %v267 = vld [vmem:[#allocation2] sm:$0xff]
    %v268 = vpack.c.bf16 %v267, %v267
    %v277 = vperm.slane %v251, 0
    %v278 = vperm.slane %v251, 1
    %v279 = vperm.slane %v251, 2
    %v280 = vperm.slane %v251, 3
    %v281 = vperm.slane %v251, 4
    %v282 = vperm.slane %v251, 5
    %v283 = vperm.slane %v251, 6
    %v284 = vperm.slane %v251, 7
    %v285 = vperm.slane %v253, 0
    %v286 = vperm.slane %v253, 1
    %v287 = vperm.slane %v253, 2
    %v288 = vperm.slane %v253, 3
    %v289 = vperm.slane %v253, 4
    %v290 = vperm.slane %v253, 5
    %v291 = vperm.slane %v253, 6
    %v292 = vperm.slane %v253, 7
    %v293 = vperm.slane %v255, 0
    %v294 = vperm.slane %v255, 1
    %v295 = vperm.slane %v255, 2
    %v296 = vperm.slane %v255, 3
    %v297 = vperm.slane %v255, 4
    %v298 = vperm.slane %v255, 5
    %v299 = vperm.slane %v255, 6
    %v300 = vperm.slane %v255, 7
    %v301 = vperm.slane %v257, 0
    %v302 = vperm.slane %v257, 1
    %v303 = vperm.slane %v257, 2
    %v304 = vperm.slane %v257, 3
    %v305 = vperm.slane %v257, 4
    %v306 = vperm.slane %v257, 5
    %v307 = vperm.slane %v257, 6
    %v308 = vperm.slane %v257, 7
    %v309 = vperm.slane %v259, 0
    %v310 = vperm.slane %v259, 1
    %v311 = vperm.slane %v259, 2
    %v312 = vperm.slane %v259, 3
    %v313 = vperm.slane %v259, 4
    %v314 = vperm.slane %v259, 5
    %v315 = vperm.slane %v259, 6
    %v316 = vperm.slane %v259, 7
    %v317 = vperm.slane %v261, 0
    %v318 = vperm.slane %v261, 1
    %v319 = vperm.slane %v261, 2
    %v320 = vperm.slane %v261, 3
    %v321 = vperm.slane %v261, 4
    %v322 = vperm.slane %v261, 5
    %v323 = vperm.slane %v261, 6
    %v324 = vperm.slane %v261, 7
    %v325 = vperm.slane %v263, 0
    %v326 = vperm.slane %v263, 1
    %v327 = vperm.slane %v263, 2
    %v328 = vperm.slane %v263, 3
    %v329 = vperm.slane %v263, 4
    %v330 = vperm.slane %v263, 5
    %v331 = vperm.slane %v263, 6
    %v332 = vperm.slane %v263, 7
    %v333 = vperm.slane %v265, 0
    %v334 = vperm.slane %v265, 1
    %v335 = vperm.slane %v265, 2
    %v336 = vperm.slane %v265, 3
    %v337 = vperm.slane %v265, 4
    %v338 = vperm.slane %v265, 5
    %v339 = vperm.slane %v265, 6
    %v340 = vperm.slane %v265, 7
    %v533 = vunpack.c.l.b16 %v59
    %v534 = vunpack.c.h.b16 %v59
    %v535 = vunpack.c.l.b16 %v60
    %v536 = vunpack.c.h.b16 %v60
    %v537 = vunpack.c.l.b16 %v61
    %v538 = vunpack.c.h.b16 %v61
    %v539 = vunpack.c.l.b16 %v62
    %v540 = vunpack.c.h.b16 %v62
    %v541 = vunpack.c.l.b16 %v63
    %v542 = vunpack.c.h.b16 %v63
    %v543 = vunpack.c.l.b16 %v64
    %v544 = vunpack.c.h.b16 %v64
    %v545 = vunpack.c.l.b16 %v65
    %v546 = vunpack.c.h.b16 %v65
    %v547 = vunpack.c.l.b16 %v66
    %v548 = vunpack.c.h.b16 %v66
    %v549 = vunpack.c.l.b16 %v67
    %v550 = vunpack.c.h.b16 %v67
    %v551 = vunpack.c.l.b16 %v68
    %v552 = vunpack.c.h.b16 %v68
    %v553 = vunpack.c.l.b16 %v69
    %v554 = vunpack.c.h.b16 %v69
    %v555 = vunpack.c.l.b16 %v70
    %v556 = vunpack.c.h.b16 %v70
    %v557 = vunpack.c.l.b16 %v71
    %v558 = vunpack.c.h.b16 %v71
    %v559 = vunpack.c.l.b16 %v72
    %v560 = vunpack.c.h.b16 %v72
    %v561 = vunpack.c.l.b16 %v73
    %v562 = vunpack.c.h.b16 %v73
    %v563 = vunpack.c.l.b16 %v74
    %v564 = vunpack.c.h.b16 %v74
    %v565 = vunpack.c.l.b16 %v75
    %v566 = vunpack.c.h.b16 %v75
    %v567 = vunpack.c.l.b16 %v76
    %v568 = vunpack.c.h.b16 %v76
    %v569 = vunpack.c.l.b16 %v77
    %v570 = vunpack.c.h.b16 %v77
    %v571 = vunpack.c.l.b16 %v78
    %v572 = vunpack.c.h.b16 %v78
    %v573 = vunpack.c.l.b16 %v79
    %v574 = vunpack.c.h.b16 %v79
    %v575 = vunpack.c.l.b16 %v80
    %v576 = vunpack.c.h.b16 %v80
    %v577 = vunpack.c.l.b16 %v81
    %v578 = vunpack.c.h.b16 %v81
    %v579 = vunpack.c.l.b16 %v82
    %v580 = vunpack.c.h.b16 %v82
    %v581 = vunpack.c.l.b16 %v83
    %v582 = vunpack.c.h.b16 %v83
    %v583 = vunpack.c.l.b16 %v84
    %v584 = vunpack.c.h.b16 %v84
    %v585 = vunpack.c.l.b16 %v85
    %v586 = vunpack.c.h.b16 %v85
    %v587 = vunpack.c.l.b16 %v86
    %v588 = vunpack.c.h.b16 %v86
    %v589 = vunpack.c.l.b16 %v87
    %v590 = vunpack.c.h.b16 %v87
    %v591 = vunpack.c.l.b16 %v88
    %v592 = vunpack.c.h.b16 %v88
    %v593 = vunpack.c.l.b16 %v89
    %v594 = vunpack.c.h.b16 %v89
    %v595 = vunpack.c.l.b16 %v90
    %v596 = vunpack.c.h.b16 %v90
    %v597 = vunpack.c.l.b16 %v91
    %v598 = vunpack.c.h.b16 %v91
    %v599 = vunpack.c.l.b16 %v92
    %v600 = vunpack.c.h.b16 %v92
    %v601 = vunpack.c.l.b16 %v93
    %v602 = vunpack.c.h.b16 %v93
    %v603 = vunpack.c.l.b16 %v94
    %v604 = vunpack.c.h.b16 %v94
    %v605 = vunpack.c.l.b16 %v95
    %v606 = vunpack.c.h.b16 %v95
    %v607 = vunpack.c.l.b16 %v96
    %v608 = vunpack.c.h.b16 %v96
    %v609 = vunpack.c.l.b16 %v97
    %v610 = vunpack.c.h.b16 %v97
    %v611 = vunpack.c.l.b16 %v98
    %v612 = vunpack.c.h.b16 %v98
    %v613 = vunpack.c.l.b16 %v99
    %v614 = vunpack.c.h.b16 %v99
    %v615 = vunpack.c.l.b16 %v100
    %v616 = vunpack.c.h.b16 %v100
    %v617 = vunpack.c.l.b16 %v101
    %v618 = vunpack.c.h.b16 %v101
    %v619 = vunpack.c.l.b16 %v102
    %v620 = vunpack.c.h.b16 %v102
    %v621 = vunpack.c.l.b16 %v103
    %v622 = vunpack.c.h.b16 %v103
    %v623 = vunpack.c.l.b16 %v104
    %v624 = vunpack.c.h.b16 %v104
    %v625 = vunpack.c.l.b16 %v105
    %v626 = vunpack.c.h.b16 %v105
    %v627 = vunpack.c.l.b16 %v106
    %v628 = vunpack.c.h.b16 %v106
    %v629 = vunpack.c.l.b16 %v107
    %v630 = vunpack.c.h.b16 %v107
    %v631 = vunpack.c.l.b16 %v108
    %v632 = vunpack.c.h.b16 %v108
    %v633 = vunpack.c.l.b16 %v109
    %v634 = vunpack.c.h.b16 %v109
    %v635 = vunpack.c.l.b16 %v110
    %v636 = vunpack.c.h.b16 %v110
    %v637 = vunpack.c.l.b16 %v111
    %v638 = vunpack.c.h.b16 %v111
    %v639 = vunpack.c.l.b16 %v112
    %v640 = vunpack.c.h.b16 %v112
    %v641 = vunpack.c.l.b16 %v113
    %v642 = vunpack.c.h.b16 %v113
    %v643 = vunpack.c.l.b16 %v114
    %v644 = vunpack.c.h.b16 %v114
    %v645 = vunpack.c.l.b16 %v115
    %v646 = vunpack.c.h.b16 %v115
    %v647 = vunpack.c.l.b16 %v116
    %v648 = vunpack.c.h.b16 %v116
    %v649 = vunpack.c.l.b16 %v117
    %v650 = vunpack.c.h.b16 %v117
    %v651 = vunpack.c.l.b16 %v118
    %v652 = vunpack.c.h.b16 %v118
    %v653 = vunpack.c.l.b16 %v119
    %v654 = vunpack.c.h.b16 %v119
    %v655 = vunpack.c.l.b16 %v120
    %v656 = vunpack.c.h.b16 %v120
    %v657 = vunpack.c.l.b16 %v121
    %v658 = vunpack.c.h.b16 %v121
    %v659 = vunpack.c.l.b16 %v122
    %v660 = vunpack.c.h.b16 %v122
    %v661 = vunpack.c.l.b16 %v123
    %v662 = vunpack.c.h.b16 %v123
    %v663 = vunpack.c.l.b16 %v124
    %v664 = vunpack.c.h.b16 %v124
    %v665 = vunpack.c.l.b16 %v125
    %v666 = vunpack.c.h.b16 %v125
    %v667 = vunpack.c.l.b16 %v126
    %v668 = vunpack.c.h.b16 %v126
    %v669 = vunpack.c.l.b16 %v127
    %v670 = vunpack.c.h.b16 %v127
    %v671 = vunpack.c.l.b16 %v128
    %v672 = vunpack.c.h.b16 %v128
    %v673 = vunpack.c.l.b16 %v129
    %v674 = vunpack.c.h.b16 %v129
    %v675 = vunpack.c.l.b16 %v130
    %v676 = vunpack.c.h.b16 %v130
    %v677 = vunpack.c.l.b16 %v131
    %v678 = vunpack.c.h.b16 %v131
    %v679 = vunpack.c.l.b16 %v132
    %v680 = vunpack.c.h.b16 %v132
    %v681 = vunpack.c.l.b16 %v133
    %v682 = vunpack.c.h.b16 %v133
    %v683 = vunpack.c.l.b16 %v134
    %v684 = vunpack.c.h.b16 %v134
    %v685 = vunpack.c.l.b16 %v135
    %v686 = vunpack.c.h.b16 %v135
    %v687 = vunpack.c.l.b16 %v136
    %v688 = vunpack.c.h.b16 %v136
    %v689 = vunpack.c.l.b16 %v137
    %v690 = vunpack.c.h.b16 %v137
    %v691 = vunpack.c.l.b16 %v138
    %v692 = vunpack.c.h.b16 %v138
    %v693 = vunpack.c.l.b16 %v139
    %v694 = vunpack.c.h.b16 %v139
    %v695 = vunpack.c.l.b16 %v140
    %v696 = vunpack.c.h.b16 %v140
    %v697 = vunpack.c.l.b16 %v141
    %v698 = vunpack.c.h.b16 %v141
    %v699 = vunpack.c.l.b16 %v142
    %v700 = vunpack.c.h.b16 %v142
    %v701 = vunpack.c.l.b16 %v143
    %v702 = vunpack.c.h.b16 %v143
    %v703 = vunpack.c.l.b16 %v144
    %v704 = vunpack.c.h.b16 %v144
    %v705 = vunpack.c.l.b16 %v145
    %v706 = vunpack.c.h.b16 %v145
    %v707 = vunpack.c.l.b16 %v146
    %v708 = vunpack.c.h.b16 %v146
    %v709 = vunpack.c.l.b16 %v147
    %v710 = vunpack.c.h.b16 %v147
    %v711 = vunpack.c.l.b16 %v148
    %v712 = vunpack.c.h.b16 %v148
    %v713 = vunpack.c.l.b16 %v149
    %v714 = vunpack.c.h.b16 %v149
    %v715 = vunpack.c.l.b16 %v150
    %v716 = vunpack.c.h.b16 %v150
    %v717 = vunpack.c.l.b16 %v151
    %v718 = vunpack.c.h.b16 %v151
    %v719 = vunpack.c.l.b16 %v152
    %v720 = vunpack.c.h.b16 %v152
    %v721 = vunpack.c.l.b16 %v153
    %v722 = vunpack.c.h.b16 %v153
    %v723 = vunpack.c.l.b16 %v154
    %v724 = vunpack.c.h.b16 %v154
    %v725 = vunpack.c.l.b16 %v155
    %v726 = vunpack.c.h.b16 %v155
    %v727 = vunpack.c.l.b16 %v156
    %v728 = vunpack.c.h.b16 %v156
    %v729 = vunpack.c.l.b16 %v157
    %v730 = vunpack.c.h.b16 %v157
    %v731 = vunpack.c.l.b16 %v158
    %v732 = vunpack.c.h.b16 %v158
    %v733 = vunpack.c.l.b16 %v159
    %v734 = vunpack.c.h.b16 %v159
    %v735 = vunpack.c.l.b16 %v160
    %v736 = vunpack.c.h.b16 %v160
    %v737 = vunpack.c.l.b16 %v161
    %v738 = vunpack.c.h.b16 %v161
    %v739 = vunpack.c.l.b16 %v162
    %v740 = vunpack.c.h.b16 %v162
    %v741 = vunpack.c.l.b16 %v163
    %v742 = vunpack.c.h.b16 %v163
    %v743 = vunpack.c.l.b16 %v164
    %v744 = vunpack.c.h.b16 %v164
    %v745 = vunpack.c.l.b16 %v165
    %v746 = vunpack.c.h.b16 %v165
    %v747 = vunpack.c.l.b16 %v166
    %v748 = vunpack.c.h.b16 %v166
    %v749 = vunpack.c.l.b16 %v167
    %v750 = vunpack.c.h.b16 %v167
    %v751 = vunpack.c.l.b16 %v168
    %v752 = vunpack.c.h.b16 %v168
    %v753 = vunpack.c.l.b16 %v169
    %v754 = vunpack.c.h.b16 %v169
    %v755 = vunpack.c.l.b16 %v170
    %v756 = vunpack.c.h.b16 %v170
    %v757 = vunpack.c.l.b16 %v171
    %v758 = vunpack.c.h.b16 %v171
    %v759 = vunpack.c.l.b16 %v172
    %v760 = vunpack.c.h.b16 %v172
    %v761 = vunpack.c.l.b16 %v173
    %v762 = vunpack.c.h.b16 %v173
    %v763 = vunpack.c.l.b16 %v174
    %v764 = vunpack.c.h.b16 %v174
    %v765 = vunpack.c.l.b16 %v175
    %v766 = vunpack.c.h.b16 %v175
    %v767 = vunpack.c.l.b16 %v176
    %v768 = vunpack.c.h.b16 %v176
    %v769 = vunpack.c.l.b16 %v177
    %v770 = vunpack.c.h.b16 %v177
    %v771 = vunpack.c.l.b16 %v178
    %v772 = vunpack.c.h.b16 %v178
    %v773 = vunpack.c.l.b16 %v179
    %v774 = vunpack.c.h.b16 %v179
    %v775 = vunpack.c.l.b16 %v180
    %v776 = vunpack.c.h.b16 %v180
    %v777 = vunpack.c.l.b16 %v181
    %v778 = vunpack.c.h.b16 %v181
    %v779 = vunpack.c.l.b16 %v182
    %v780 = vunpack.c.h.b16 %v182
    %v781 = vunpack.c.l.b16 %v183
    %v782 = vunpack.c.h.b16 %v183
    %v783 = vunpack.c.l.b16 %v184
    %v784 = vunpack.c.h.b16 %v184
    %v785 = vunpack.c.l.b16 %v185
    %v786 = vunpack.c.h.b16 %v185
    %v787 = vunpack.c.l.b16 %v186
    %v788 = vunpack.c.h.b16 %v186
    %v789 = vpack.c.b16 %v597, %v533
    %v790 = vpack.c.b16 %v598, %v534
    %v791 = vpack.c.b16 %v599, %v535
    %v792 = vpack.c.b16 %v600, %v536
    %v793 = vpack.c.b16 %v601, %v537
    %v794 = vpack.c.b16 %v602, %v538
    %v795 = vpack.c.b16 %v603, %v539
    %v796 = vpack.c.b16 %v604, %v540
    %v797 = vpack.c.b16 %v605, %v541
    %v798 = vpack.c.b16 %v606, %v542
    %v799 = vpack.c.b16 %v607, %v543
    %v800 = vpack.c.b16 %v608, %v544
    %v801 = vpack.c.b16 %v609, %v545
    %v802 = vpack.c.b16 %v610, %v546
    %v803 = vpack.c.b16 %v611, %v547
    %v804 = vpack.c.b16 %v612, %v548
    %v805 = vpack.c.b16 %v613, %v549
    %v806 = vpack.c.b16 %v614, %v550
    %v807 = vpack.c.b16 %v615, %v551
    %v808 = vpack.c.b16 %v616, %v552
    %v809 = vpack.c.b16 %v617, %v553
    %v810 = vpack.c.b16 %v618, %v554
    %v811 = vpack.c.b16 %v619, %v555
    %v812 = vpack.c.b16 %v620, %v556
    %v813 = vpack.c.b16 %v621, %v557
    %v814 = vpack.c.b16 %v622, %v558
    %v815 = vpack.c.b16 %v623, %v559
    %v816 = vpack.c.b16 %v624, %v560
    %v817 = vpack.c.b16 %v625, %v561
    %v818 = vpack.c.b16 %v626, %v562
    %v819 = vpack.c.b16 %v627, %v563
    %v820 = vpack.c.b16 %v628, %v564
    %v821 = vpack.c.b16 %v629, %v565
    %v822 = vpack.c.b16 %v630, %v566
    %v823 = vpack.c.b16 %v631, %v567
    %v824 = vpack.c.b16 %v632, %v568
    %v825 = vpack.c.b16 %v633, %v569
    %v826 = vpack.c.b16 %v634, %v570
    %v827 = vpack.c.b16 %v635, %v571
    %v828 = vpack.c.b16 %v636, %v572
    %v829 = vpack.c.b16 %v637, %v573
    %v830 = vpack.c.b16 %v638, %v574
    %v831 = vpack.c.b16 %v639, %v575
    %v832 = vpack.c.b16 %v640, %v576
    %v833 = vpack.c.b16 %v641, %v577
    %v834 = vpack.c.b16 %v642, %v578
    %v835 = vpack.c.b16 %v643, %v579
    %v836 = vpack.c.b16 %v644, %v580
    %v837 = vpack.c.b16 %v645, %v581
    %v838 = vpack.c.b16 %v646, %v582
    %v839 = vpack.c.b16 %v647, %v583
    %v840 = vpack.c.b16 %v648, %v584
    %v841 = vpack.c.b16 %v649, %v585
    %v842 = vpack.c.b16 %v650, %v586
    %v843 = vpack.c.b16 %v651, %v587
    %v844 = vpack.c.b16 %v652, %v588
    %v845 = vpack.c.b16 %v653, %v589
    %v846 = vpack.c.b16 %v654, %v590
    %v847 = vpack.c.b16 %v655, %v591
    %v848 = vpack.c.b16 %v656, %v592
    %v849 = vpack.c.b16 %v657, %v593
    %v850 = vpack.c.b16 %v658, %v594
    %v851 = vpack.c.b16 %v659, %v595
    %v852 = vpack.c.b16 %v660, %v596
    %v853 = vpack.c.b16 %v725, %v661
    %v854 = vpack.c.b16 %v726, %v662
    %v855 = vpack.c.b16 %v727, %v663
    %v856 = vpack.c.b16 %v728, %v664
    %v857 = vpack.c.b16 %v729, %v665
    %v858 = vpack.c.b16 %v730, %v666
    %v859 = vpack.c.b16 %v731, %v667
    %v860 = vpack.c.b16 %v732, %v668
    %v861 = vpack.c.b16 %v733, %v669
    %v862 = vpack.c.b16 %v734, %v670
    %v863 = vpack.c.b16 %v735, %v671
    %v864 = vpack.c.b16 %v736, %v672
    %v865 = vpack.c.b16 %v737, %v673
    %v866 = vpack.c.b16 %v738, %v674
    %v867 = vpack.c.b16 %v739, %v675
    %v868 = vpack.c.b16 %v740, %v676
    %v869 = vpack.c.b16 %v741, %v677
    %v870 = vpack.c.b16 %v742, %v678
    %v871 = vpack.c.b16 %v743, %v679
    %v872 = vpack.c.b16 %v744, %v680
    %v873 = vpack.c.b16 %v745, %v681
    %v874 = vpack.c.b16 %v746, %v682
    %v875 = vpack.c.b16 %v747, %v683
    %v876 = vpack.c.b16 %v748, %v684
    %v877 = vpack.c.b16 %v749, %v685
    %v878 = vpack.c.b16 %v750, %v686
    %v879 = vpack.c.b16 %v751, %v687
    %v880 = vpack.c.b16 %v752, %v688
    %v881 = vpack.c.b16 %v753, %v689
    %v882 = vpack.c.b16 %v754, %v690
    %v883 = vpack.c.b16 %v755, %v691
    %v884 = vpack.c.b16 %v756, %v692
    %v885 = vpack.c.b16 %v757, %v693
    %v886 = vpack.c.b16 %v758, %v694
    %v887 = vpack.c.b16 %v759, %v695
    %v888 = vpack.c.b16 %v760, %v696
    %v889 = vpack.c.b16 %v761, %v697
    %v890 = vpack.c.b16 %v762, %v698
    %v891 = vpack.c.b16 %v763, %v699
    %v892 = vpack.c.b16 %v764, %v700
    %v893 = vpack.c.b16 %v765, %v701
    %v894 = vpack.c.b16 %v766, %v702
    %v895 = vpack.c.b16 %v767, %v703
    %v896 = vpack.c.b16 %v768, %v704
    %v897 = vpack.c.b16 %v769, %v705
    %v898 = vpack.c.b16 %v770, %v706
    %v899 = vpack.c.b16 %v771, %v707
    %v900 = vpack.c.b16 %v772, %v708
    %v901 = vpack.c.b16 %v773, %v709
    %v902 = vpack.c.b16 %v774, %v710
    %v903 = vpack.c.b16 %v775, %v711
    %v904 = vpack.c.b16 %v776, %v712
    %v905 = vpack.c.b16 %v777, %v713
    %v906 = vpack.c.b16 %v778, %v714
    %v907 = vpack.c.b16 %v779, %v715
    %v908 = vpack.c.b16 %v780, %v716
    %v909 = vpack.c.b16 %v781, %v717
    %v910 = vpack.c.b16 %v782, %v718
    %v911 = vpack.c.b16 %v783, %v719
    %v912 = vpack.c.b16 %v784, %v720
    %v913 = vpack.c.b16 %v785, %v721
    %v914 = vpack.c.b16 %v786, %v722
    %v915 = vpack.c.b16 %v787, %v723
    %v916 = vpack.c.b16 %v788, %v724
    %vm1045 = vcmask 261120
    %v1047 = vsel %vm1045, %v268, 0
    %1049 = vmatpush.bf16.msra.mxu0 0
    %1050 = vmatpush.bf16.msra.mxu0 0
    %1051 = vmatpush.bf16.msra.mxu0 0
    %1052 = vmatpush.bf16.msra.mxu0 0
    %1053 = vmatpush.bf16.msra.mxu0 0
    %1054 = vmatpush.bf16.msra.mxu0 0
    %1055 = vmatpush.bf16.msra.mxu0 %v853
    %1056 = vmatpush.bf16.msra.mxu0 %v789
    %1057 = vmatmul.bf16.gmra.mxu0 %v1047
    %v1058 = vpop.f32.mrf.mxu0
    %v1059 = vadd.f32 %v277, %v1058
    %v1060 = vpop.f32.mrf.mxu0
    %1061 = vdwg.mxu0
    %1062 = vmatpush.bf16.msra.mxu0 0
    %1063 = vmatpush.bf16.msra.mxu0 0
    %1064 = vmatpush.bf16.msra.mxu0 0
    %1065 = vmatpush.bf16.msra.mxu0 0
    %1066 = vmatpush.bf16.msra.mxu0 0
    %1067 = vmatpush.bf16.msra.mxu0 0
    %1068 = vmatpush.bf16.msra.mxu0 %v854
    %1069 = vmatpush.bf16.msra.mxu0 %v790
    %1070 = vmatmul.bf16.gmra.mxu0 %v1047
    %v1071 = vpop.f32.mrf.mxu0
    %v1072 = vadd.f32 %v278, %v1071
    %v1073 = vpop.f32.mrf.mxu0
    %1074 = vdwg.mxu0
    %1075 = vmatpush.bf16.msra.mxu0 0
    %1076 = vmatpush.bf16.msra.mxu0 0
    %1077 = vmatpush.bf16.msra.mxu0 0
    %1078 = vmatpush.bf16.msra.mxu0 0
    %1079 = vmatpush.bf16.msra.mxu0 0
    %1080 = vmatpush.bf16.msra.mxu0 0
    %1081 = vmatpush.bf16.msra.mxu0 %v855
    %1082 = vmatpush.bf16.msra.mxu0 %v791
    %1083 = vmatmul.bf16.gmra.mxu0 %v1047
    %v1084 = vpop.f32.mrf.mxu0
    %v1085 = vadd.f32 %v279, %v1084
    %v1086 = vpop.f32.mrf.mxu0
    %1087 = vdwg.mxu0
    %1088 = vmatpush.bf16.msra.mxu0 0
    %1089 = vmatpush.bf16.msra.mxu0 0
    %1090 = vmatpush.bf16.msra.mxu0 0
    %1091 = vmatpush.bf16.msra.mxu0 0
    %1092 = vmatpush.bf16.msra.mxu0 0
    %1093 = vmatpush.bf16.msra.mxu0 0
    %1094 = vmatpush.bf16.msra.mxu0 %v856
    %1095 = vmatpush.bf16.msra.mxu0 %v792
    %1096 = vmatmul.bf16.gmra.mxu0 %v1047
    %v1097 = vpop.f32.mrf.mxu0
    %v1098 = vadd.f32 %v280, %v1097
    %v1099 = vpop.f32.mrf.mxu0
    %1100 = vdwg.mxu0
    %1101 = vmatpush.bf16.msra.mxu0 0
    %1102 = vmatpush.bf16.msra.mxu0 0
    %1103 = vmatpush.bf16.msra.mxu0 0
    %1104 = vmatpush.bf16.msra.mxu0 0
    %1105 = vmatpush.bf16.msra.mxu0 0
    %1106 = vmatpush.bf16.msra.mxu0 0
    %1107 = vmatpush.bf16.msra.mxu0 %v857
    %1108 = vmatpush.bf16.msra.mxu0 %v793
    %1109 = vmatmul.bf16.gmra.mxu0 %v1047
    %v1110 = vpop.f32.mrf.mxu0
    %v1111 = vadd.f32 %v281, %v1110
    %v1112 = vpop.f32.mrf.mxu0
    %1113 = vdwg.mxu0
    %1114 = vmatpush.bf16.msra.mxu0 0
    %1115 = vmatpush.bf16.msra.mxu0 0
    %1116 = vmatpush.bf16.msra.mxu0 0
    %1117 = vmatpush.bf16.msra.mxu0 0
    %1118 = vmatpush.bf16.msra.mxu0 0
    %1119 = vmatpush.bf16.msra.mxu0 0
    %1120 = vmatpush.bf16.msra.mxu0 %v858
    %1121 = vmatpush.bf16.msra.mxu0 %v794
    %1122 = vmatmul.bf16.gmra.mxu0 %v1047
    %v1123 = vpop.f32.mrf.mxu0
    %v1124 = vadd.f32 %v282, %v1123
    %v1125 = vpop.f32.mrf.mxu0
    %1126 = vdwg.mxu0
    %1127 = vmatpush.bf16.msra.mxu0 0
    %1128 = vmatpush.bf16.msra.mxu0 0
    %1129 = vmatpush.bf16.msra.mxu0 0
    %1130 = vmatpush.bf16.msra.mxu0 0
    %1131 = vmatpush.bf16.msra.mxu0 0
    %1132 = vmatpush.bf16.msra.mxu0 0
    %1133 = vmatpush.bf16.msra.mxu0 %v859
    %1134 = vmatpush.bf16.msra.mxu0 %v795
    %1135 = vmatmul.bf16.gmra.mxu0 %v1047
    %v1136 = vpop.f32.mrf.mxu0
    %v1137 = vadd.f32 %v283, %v1136
    %v1138 = vpop.f32.mrf.mxu0
    %1139 = vdwg.mxu0
    %1140 = vmatpush.bf16.msra.mxu0 0
    %1141 = vmatpush.bf16.msra.mxu0 0
    %1142 = vmatpush.bf16.msra.mxu0 0
    %1143 = vmatpush.bf16.msra.mxu0 0
    %1144 = vmatpush.bf16.msra.mxu0 0
    %1145 = vmatpush.bf16.msra.mxu0 0
    %1146 = vmatpush.bf16.msra.mxu0 %v860
    %1147 = vmatpush.bf16.msra.mxu0 %v796
    %1148 = vmatmul.bf16.gmra.mxu0 %v1047
    %v1149 = vpop.f32.mrf.mxu0
    %v1150 = vadd.f32 %v284, %v1149
    %v1151 = vpop.f32.mrf.mxu0
    %1152 = vdwg.mxu0
    %1153 = vmatpush.bf16.msra.mxu0 0
    %1154 = vmatpush.bf16.msra.mxu0 0
    %1155 = vmatpush.bf16.msra.mxu0 0
    %1156 = vmatpush.bf16.msra.mxu0 0
    %1157 = vmatpush.bf16.msra.mxu0 0
    %1158 = vmatpush.bf16.msra.mxu0 0
    %1159 = vmatpush.bf16.msra.mxu0 %v861
    %1160 = vmatpush.bf16.msra.mxu0 %v797
    %1161 = vmatmul.bf16.gmra.mxu0 %v1047
    %v1162 = vpop.f32.mrf.mxu0
    %v1163 = vadd.f32 %v285, %v1162
    %v1164 = vpop.f32.mrf.mxu0
    %1165 = vdwg.mxu0
    %1166 = vmatpush.bf16.msra.mxu0 0
    %1167 = vmatpush.bf16.msra.mxu0 0
    %1168 = vmatpush.bf16.msra.mxu0 0
    %1169 = vmatpush.bf16.msra.mxu0 0
    %1170 = vmatpush.bf16.msra.mxu0 0
    %1171 = vmatpush.bf16.msra.mxu0 0
    %1172 = vmatpush.bf16.msra.mxu0 %v862
    %1173 = vmatpush.bf16.msra.mxu0 %v798
    %1174 = vmatmul.bf16.gmra.mxu0 %v1047
    %v1175 = vpop.f32.mrf.mxu0
    %v1176 = vadd.f32 %v286, %v1175
    %v1177 = vpop.f32.mrf.mxu0
    %1178 = vdwg.mxu0
    %1179 = vmatpush.bf16.msra.mxu0 0
    %1180 = vmatpush.bf16.msra.mxu0 0
    %1181 = vmatpush.bf16.msra.mxu0 0
    %1182 = vmatpush.bf16.msra.mxu0 0
    %1183 = vmatpush.bf16.msra.mxu0 0
    %1184 = vmatpush.bf16.msra.mxu0 0
    %1185 = vmatpush.bf16.msra.mxu0 %v863
    %1186 = vmatpush.bf16.msra.mxu0 %v799
    %1187 = vmatmul.bf16.gmra.mxu0 %v1047
    %v1188 = vpop.f32.mrf.mxu0
    %v1189 = vadd.f32 %v287, %v1188
    %v1190 = vpop.f32.mrf.mxu0
    %1191 = vdwg.mxu0
    %1192 = vmatpush.bf16.msra.mxu0 0
    %1193 = vmatpush.bf16.msra.mxu0 0
    %1194 = vmatpush.bf16.msra.mxu0 0
    %1195 = vmatpush.bf16.msra.mxu0 0
    %1196 = vmatpush.bf16.msra.mxu0 0
    %1197 = vmatpush.bf16.msra.mxu0 0
    %1198 = vmatpush.bf16.msra.mxu0 %v864
    %1199 = vmatpush.bf16.msra.mxu0 %v800
    %1200 = vmatmul.bf16.gmra.mxu0 %v1047
    %v1201 = vpop.f32.mrf.mxu0
    %v1202 = vadd.f32 %v288, %v1201
    %v1203 = vpop.f32.mrf.mxu0
    %1204 = vdwg.mxu0
    %1205 = vmatpush.bf16.msra.mxu0 0
    %1206 = vmatpush.bf16.msra.mxu0 0
    %1207 = vmatpush.bf16.msra.mxu0 0
    %1208 = vmatpush.bf16.msra.mxu0 0
    %1209 = vmatpush.bf16.msra.mxu0 0
    %1210 = vmatpush.bf16.msra.mxu0 0
    %1211 = vmatpush.bf16.msra.mxu0 %v865
    %1212 = vmatpush.bf16.msra.mxu0 %v801
    %1213 = vmatmul.bf16.gmra.mxu0 %v1047
    %v1214 = vpop.f32.mrf.mxu0
    %v1215 = vadd.f32 %v289, %v1214
    %v1216 = vpop.f32.mrf.mxu0
    %1217 = vdwg.mxu0
    %1218 = vmatpush.bf16.msra.mxu0 0
    %1219 = vmatpush.bf16.msra.mxu0 0
    %1220 = vmatpush.bf16.msra.mxu0 0
    %1221 = vmatpush.bf16.msra.mxu0 0
    %1222 = vmatpush.bf16.msra.mxu0 0
    %1223 = vmatpush.bf16.msra.mxu0 0
    %1224 = vmatpush.bf16.msra.mxu0 %v866
    %1225 = vmatpush.bf16.msra.mxu0 %v802
    %1226 = vmatmul.bf16.gmra.mxu0 %v1047
    %v1227 = vpop.f32.mrf.mxu0
    %v1228 = vadd.f32 %v290, %v1227
    %v1229 = vpop.f32.mrf.mxu0
    %1230 = vdwg.mxu0
    %1231 = vmatpush.bf16.msra.mxu0 0
    %1232 = vmatpush.bf16.msra.mxu0 0
    %1233 = vmatpush.bf16.msra.mxu0 0
    %1234 = vmatpush.bf16.msra.mxu0 0
    %1235 = vmatpush.bf16.msra.mxu0 0
    %1236 = vmatpush.bf16.msra.mxu0 0
    %1237 = vmatpush.bf16.msra.mxu0 %v867
    %1238 = vmatpush.bf16.msra.mxu0 %v803
    %1239 = vmatmul.bf16.gmra.mxu0 %v1047
    %v1240 = vpop.f32.mrf.mxu0
    %v1241 = vadd.f32 %v291, %v1240
    %v1242 = vpop.f32.mrf.mxu0
    %1243 = vdwg.mxu0
    %1244 = vmatpush.bf16.msra.mxu0 0
    %1245 = vmatpush.bf16.msra.mxu0 0
    %1246 = vmatpush.bf16.msra.mxu0 0
    %1247 = vmatpush.bf16.msra.mxu0 0
    %1248 = vmatpush.bf16.msra.mxu0 0
    %1249 = vmatpush.bf16.msra.mxu0 0
    %1250 = vmatpush.bf16.msra.mxu0 %v868
    %1251 = vmatpush.bf16.msra.mxu0 %v804
    %1252 = vmatmul.bf16.gmra.mxu0 %v1047
    %v1253 = vpop.f32.mrf.mxu0
    %v1254 = vadd.f32 %v292, %v1253
    %v1255 = vpop.f32.mrf.mxu0
    %1256 = vdwg.mxu0
    %1257 = vmatpush.bf16.msra.mxu0 0
    %1258 = vmatpush.bf16.msra.mxu0 0
    %1259 = vmatpush.bf16.msra.mxu0 0
    %1260 = vmatpush.bf16.msra.mxu0 0
    %1261 = vmatpush.bf16.msra.mxu0 0
    %1262 = vmatpush.bf16.msra.mxu0 0
    %1263 = vmatpush.bf16.msra.mxu0 %v869
    %1264 = vmatpush.bf16.msra.mxu0 %v805
    %1265 = vmatmul.bf16.gmra.mxu0 %v1047
    %v1266 = vpop.f32.mrf.mxu0
    %v1267 = vadd.f32 %v293, %v1266
    %v1268 = vpop.f32.mrf.mxu0
    %1269 = vdwg.mxu0
    %1270 = vmatpush.bf16.msra.mxu0 0
    %1271 = vmatpush.bf16.msra.mxu0 0
    %1272 = vmatpush.bf16.msra.mxu0 0
    %1273 = vmatpush.bf16.msra.mxu0 0
    %1274 = vmatpush.bf16.msra.mxu0 0
    %1275 = vmatpush.bf16.msra.mxu0 0
    %1276 = vmatpush.bf16.msra.mxu0 %v870
    %1277 = vmatpush.bf16.msra.mxu0 %v806
    %1278 = vmatmul.bf16.gmra.mxu0 %v1047
    %v1279 = vpop.f32.mrf.mxu0
    %v1280 = vadd.f32 %v294, %v1279
    %v1281 = vpop.f32.mrf.mxu0
    %1282 = vdwg.mxu0
    %1283 = vmatpush.bf16.msra.mxu0 0
    %1284 = vmatpush.bf16.msra.mxu0 0
    %1285 = vmatpush.bf16.msra.mxu0 0
    %1286 = vmatpush.bf16.msra.mxu0 0
    %1287 = vmatpush.bf16.msra.mxu0 0
    %1288 = vmatpush.bf16.msra.mxu0 0
    %1289 = vmatpush.bf16.msra.mxu0 %v871
    %1290 = vmatpush.bf16.msra.mxu0 %v807
    %1291 = vmatmul.bf16.gmra.mxu0 %v1047
    %v1292 = vpop.f32.mrf.mxu0
    %v1293 = vadd.f32 %v295, %v1292
    %v1294 = vpop.f32.mrf.mxu0
    %1295 = vdwg.mxu0
    %1296 = vmatpush.bf16.msra.mxu0 0
    %1297 = vmatpush.bf16.msra.mxu0 0
    %1298 = vmatpush.bf16.msra.mxu0 0
    %1299 = vmatpush.bf16.msra.mxu0 0
    %1300 = vmatpush.bf16.msra.mxu0 0
    %1301 = vmatpush.bf16.msra.mxu0 0
    %1302 = vmatpush.bf16.msra.mxu0 %v872
    %1303 = vmatpush.bf16.msra.mxu0 %v808
    %1304 = vmatmul.bf16.gmra.mxu0 %v1047
    %v1305 = vpop.f32.mrf.mxu0
    %v1306 = vadd.f32 %v296, %v1305
    %v1307 = vpop.f32.mrf.mxu0
    %1308 = vdwg.mxu0
    %1309 = vmatpush.bf16.msra.mxu0 0
    %1310 = vmatpush.bf16.msra.mxu0 0
    %1311 = vmatpush.bf16.msra.mxu0 0
    %1312 = vmatpush.bf16.msra.mxu0 0
    %1313 = vmatpush.bf16.msra.mxu0 0
    %1314 = vmatpush.bf16.msra.mxu0 0
    %1315 = vmatpush.bf16.msra.mxu0 %v873
    %1316 = vmatpush.bf16.msra.mxu0 %v809
    %1317 = vmatmul.bf16.gmra.mxu0 %v1047
    %v1318 = vpop.f32.mrf.mxu0
    %v1319 = vadd.f32 %v297, %v1318
    %v1320 = vpop.f32.mrf.mxu0
    %1321 = vdwg.mxu0
    %1322 = vmatpush.bf16.msra.mxu0 0
    %1323 = vmatpush.bf16.msra.mxu0 0
    %1324 = vmatpush.bf16.msra.mxu0 0
    %1325 = vmatpush.bf16.msra.mxu0 0
    %1326 = vmatpush.bf16.msra.mxu0 0
    %1327 = vmatpush.bf16.msra.mxu0 0
    %1328 = vmatpush.bf16.msra.mxu0 %v874
    %1329 = vmatpush.bf16.msra.mxu0 %v810
    %1330 = vmatmul.bf16.gmra.mxu0 %v1047
    %v1331 = vpop.f32.mrf.mxu0
    %v1332 = vadd.f32 %v298, %v1331
    %v1333 = vpop.f32.mrf.mxu0
    %1334 = vdwg.mxu0
    %1335 = vmatpush.bf16.msra.mxu0 0
    %1336 = vmatpush.bf16.msra.mxu0 0
    %1337 = vmatpush.bf16.msra.mxu0 0
    %1338 = vmatpush.bf16.msra.mxu0 0
    %1339 = vmatpush.bf16.msra.mxu0 0
    %1340 = vmatpush.bf16.msra.mxu0 0
    %1341 = vmatpush.bf16.msra.mxu0 %v875
    %1342 = vmatpush.bf16.msra.mxu0 %v811
    %1343 = vmatmul.bf16.gmra.mxu0 %v1047
    %v1344 = vpop.f32.mrf.mxu0
    %v1345 = vadd.f32 %v299, %v1344
    %v1346 = vpop.f32.mrf.mxu0
    %1347 = vdwg.mxu0
    %1348 = vmatpush.bf16.msra.mxu0 0
    %1349 = vmatpush.bf16.msra.mxu0 0
    %1350 = vmatpush.bf16.msra.mxu0 0
    %1351 = vmatpush.bf16.msra.mxu0 0
    %1352 = vmatpush.bf16.msra.mxu0 0
    %1353 = vmatpush.bf16.msra.mxu0 0
    %1354 = vmatpush.bf16.msra.mxu0 %v876
    %1355 = vmatpush.bf16.msra.mxu0 %v812
    %1356 = vmatmul.bf16.gmra.mxu0 %v1047
    %v1357 = vpop.f32.mrf.mxu0
    %v1358 = vadd.f32 %v300, %v1357
    %v1359 = vpop.f32.mrf.mxu0
    %1360 = vdwg.mxu0
    %1361 = vmatpush.bf16.msra.mxu0 0
    %1362 = vmatpush.bf16.msra.mxu0 0
    %1363 = vmatpush.bf16.msra.mxu0 0
    %1364 = vmatpush.bf16.msra.mxu0 0
    %1365 = vmatpush.bf16.msra.mxu0 0
    %1366 = vmatpush.bf16.msra.mxu0 0
    %1367 = vmatpush.bf16.msra.mxu0 %v877
    %1368 = vmatpush.bf16.msra.mxu0 %v813
    %1369 = vmatmul.bf16.gmra.mxu0 %v1047
    %v1370 = vpop.f32.mrf.mxu0
    %v1371 = vadd.f32 %v301, %v1370
    %v1372 = vpop.f32.mrf.mxu0
    %1373 = vdwg.mxu0
    %1374 = vmatpush.bf16.msra.mxu0 0
    %1375 = vmatpush.bf16.msra.mxu0 0
    %1376 = vmatpush.bf16.msra.mxu0 0
    %1377 = vmatpush.bf16.msra.mxu0 0
    %1378 = vmatpush.bf16.msra.mxu0 0
    %1379 = vmatpush.bf16.msra.mxu0 0
    %1380 = vmatpush.bf16.msra.mxu0 %v878
    %1381 = vmatpush.bf16.msra.mxu0 %v814
    %1382 = vmatmul.bf16.gmra.mxu0 %v1047
    %v1383 = vpop.f32.mrf.mxu0
    %v1384 = vadd.f32 %v302, %v1383
    %v1385 = vpop.f32.mrf.mxu0
    %1386 = vdwg.mxu0
    %1387 = vmatpush.bf16.msra.mxu0 0
    %1388 = vmatpush.bf16.msra.mxu0 0
    %1389 = vmatpush.bf16.msra.mxu0 0
    %1390 = vmatpush.bf16.msra.mxu0 0
    %1391 = vmatpush.bf16.msra.mxu0 0
    %1392 = vmatpush.bf16.msra.mxu0 0
    %1393 = vmatpush.bf16.msra.mxu0 %v879
    %1394 = vmatpush.bf16.msra.mxu0 %v815
    %1395 = vmatmul.bf16.gmra.mxu0 %v1047
    %v1396 = vpop.f32.mrf.mxu0
    %v1397 = vadd.f32 %v303, %v1396
    %v1398 = vpop.f32.mrf.mxu0
    %1399 = vdwg.mxu0
    %1400 = vmatpush.bf16.msra.mxu0 0
    %1401 = vmatpush.bf16.msra.mxu0 0
    %1402 = vmatpush.bf16.msra.mxu0 0
    %1403 = vmatpush.bf16.msra.mxu0 0
    %1404 = vmatpush.bf16.msra.mxu0 0
    %1405 = vmatpush.bf16.msra.mxu0 0
    %1406 = vmatpush.bf16.msra.mxu0 %v880
    %1407 = vmatpush.bf16.msra.mxu0 %v816
    %1408 = vmatmul.bf16.gmra.mxu0 %v1047
    %v1409 = vpop.f32.mrf.mxu0
    %v1410 = vadd.f32 %v304, %v1409
    %v1411 = vpop.f32.mrf.mxu0
    %1412 = vdwg.mxu0
    %1413 = vmatpush.bf16.msra.mxu0 0
    %1414 = vmatpush.bf16.msra.mxu0 0
    %1415 = vmatpush.bf16.msra.mxu0 0
    %1416 = vmatpush.bf16.msra.mxu0 0
    %1417 = vmatpush.bf16.msra.mxu0 0
    %1418 = vmatpush.bf16.msra.mxu0 0
    %1419 = vmatpush.bf16.msra.mxu0 %v881
    %1420 = vmatpush.bf16.msra.mxu0 %v817
    %1421 = vmatmul.bf16.gmra.mxu0 %v1047
    %v1422 = vpop.f32.mrf.mxu0
    %v1423 = vadd.f32 %v305, %v1422
    %v1424 = vpop.f32.mrf.mxu0
    %1425 = vdwg.mxu0
    %1426 = vmatpush.bf16.msra.mxu0 0
    %1427 = vmatpush.bf16.msra.mxu0 0
    %1428 = vmatpush.bf16.msra.mxu0 0
    %1429 = vmatpush.bf16.msra.mxu0 0
    %1430 = vmatpush.bf16.msra.mxu0 0
    %1431 = vmatpush.bf16.msra.mxu0 0
    %1432 = vmatpush.bf16.msra.mxu0 %v882
    %1433 = vmatpush.bf16.msra.mxu0 %v818
    %1434 = vmatmul.bf16.gmra.mxu0 %v1047
    %v1435 = vpop.f32.mrf.mxu0
    %v1436 = vadd.f32 %v306, %v1435
    %v1437 = vpop.f32.mrf.mxu0
    %1438 = vdwg.mxu0
    %1439 = vmatpush.bf16.msra.mxu0 0
    %1440 = vmatpush.bf16.msra.mxu0 0
    %1441 = vmatpush.bf16.msra.mxu0 0
    %1442 = vmatpush.bf16.msra.mxu0 0
    %1443 = vmatpush.bf16.msra.mxu0 0
    %1444 = vmatpush.bf16.msra.mxu0 0
    %1445 = vmatpush.bf16.msra.mxu0 %v883
    %1446 = vmatpush.bf16.msra.mxu0 %v819
    %1447 = vmatmul.bf16.gmra.mxu0 %v1047
    %v1448 = vpop.f32.mrf.mxu0
    %v1449 = vadd.f32 %v307, %v1448
    %v1450 = vpop.f32.mrf.mxu0
    %1451 = vdwg.mxu0
    %1452 = vmatpush.bf16.msra.mxu0 0
    %1453 = vmatpush.bf16.msra.mxu0 0
    %1454 = vmatpush.bf16.msra.mxu0 0
    %1455 = vmatpush.bf16.msra.mxu0 0
    %1456 = vmatpush.bf16.msra.mxu0 0
    %1457 = vmatpush.bf16.msra.mxu0 0
    %1458 = vmatpush.bf16.msra.mxu0 %v884
    %1459 = vmatpush.bf16.msra.mxu0 %v820
    %1460 = vmatmul.bf16.gmra.mxu0 %v1047
    %v1461 = vpop.f32.mrf.mxu0
    %v1462 = vadd.f32 %v308, %v1461
    %v1463 = vpop.f32.mrf.mxu0
    %1464 = vdwg.mxu0
    %1465 = vmatpush.bf16.msra.mxu0 0
    %1466 = vmatpush.bf16.msra.mxu0 0
    %1467 = vmatpush.bf16.msra.mxu0 0
    %1468 = vmatpush.bf16.msra.mxu0 0
    %1469 = vmatpush.bf16.msra.mxu0 0
    %1470 = vmatpush.bf16.msra.mxu0 0
    %1471 = vmatpush.bf16.msra.mxu0 %v885
    %1472 = vmatpush.bf16.msra.mxu0 %v821
    %1473 = vmatmul.bf16.gmra.mxu0 %v1047
    %v1474 = vpop.f32.mrf.mxu0
    %v1475 = vadd.f32 %v309, %v1474
    %v1476 = vpop.f32.mrf.mxu0
    %1477 = vdwg.mxu0
    %1478 = vmatpush.bf16.msra.mxu0 0
    %1479 = vmatpush.bf16.msra.mxu0 0
    %1480 = vmatpush.bf16.msra.mxu0 0
    %1481 = vmatpush.bf16.msra.mxu0 0
    %1482 = vmatpush.bf16.msra.mxu0 0
    %1483 = vmatpush.bf16.msra.mxu0 0
    %1484 = vmatpush.bf16.msra.mxu0 %v886
    %1485 = vmatpush.bf16.msra.mxu0 %v822
    %1486 = vmatmul.bf16.gmra.mxu0 %v1047
    %v1487 = vpop.f32.mrf.mxu0
    %v1488 = vadd.f32 %v310, %v1487
    %v1489 = vpop.f32.mrf.mxu0
    %1490 = vdwg.mxu0
    %1491 = vmatpush.bf16.msra.mxu0 0
    %1492 = vmatpush.bf16.msra.mxu0 0
    %1493 = vmatpush.bf16.msra.mxu0 0
    %1494 = vmatpush.bf16.msra.mxu0 0
    %1495 = vmatpush.bf16.msra.mxu0 0
    %1496 = vmatpush.bf16.msra.mxu0 0
    %1497 = vmatpush.bf16.msra.mxu0 %v887
    %1498 = vmatpush.bf16.msra.mxu0 %v823
    %1499 = vmatmul.bf16.gmra.mxu0 %v1047
    %v1500 = vpop.f32.mrf.mxu0
    %v1501 = vadd.f32 %v311, %v1500
    %v1502 = vpop.f32.mrf.mxu0
    %1503 = vdwg.mxu0
    %1504 = vmatpush.bf16.msra.mxu0 0
    %1505 = vmatpush.bf16.msra.mxu0 0
    %1506 = vmatpush.bf16.msra.mxu0 0
    %1507 = vmatpush.bf16.msra.mxu0 0
    %1508 = vmatpush.bf16.msra.mxu0 0
    %1509 = vmatpush.bf16.msra.mxu0 0
    %1510 = vmatpush.bf16.msra.mxu0 %v888
    %1511 = vmatpush.bf16.msra.mxu0 %v824
    %1512 = vmatmul.bf16.gmra.mxu0 %v1047
    %v1513 = vpop.f32.mrf.mxu0
    %v1514 = vadd.f32 %v312, %v1513
    %v1515 = vpop.f32.mrf.mxu0
    %1516 = vdwg.mxu0
    %1517 = vmatpush.bf16.msra.mxu0 0
    %1518 = vmatpush.bf16.msra.mxu0 0
    %1519 = vmatpush.bf16.msra.mxu0 0
    %1520 = vmatpush.bf16.msra.mxu0 0
    %1521 = vmatpush.bf16.msra.mxu0 0
    %1522 = vmatpush.bf16.msra.mxu0 0
    %1523 = vmatpush.bf16.msra.mxu0 %v889
    %1524 = vmatpush.bf16.msra.mxu0 %v825
    %1525 = vmatmul.bf16.gmra.mxu0 %v1047
    %v1526 = vpop.f32.mrf.mxu0
    %v1527 = vadd.f32 %v313, %v1526
    %v1528 = vpop.f32.mrf.mxu0
    %1529 = vdwg.mxu0
    %1530 = vmatpush.bf16.msra.mxu0 0
    %1531 = vmatpush.bf16.msra.mxu0 0
    %1532 = vmatpush.bf16.msra.mxu0 0
    %1533 = vmatpush.bf16.msra.mxu0 0
    %1534 = vmatpush.bf16.msra.mxu0 0
    %1535 = vmatpush.bf16.msra.mxu0 0
    %1536 = vmatpush.bf16.msra.mxu0 %v890
    %1537 = vmatpush.bf16.msra.mxu0 %v826
    %1538 = vmatmul.bf16.gmra.mxu0 %v1047
    %v1539 = vpop.f32.mrf.mxu0
    %v1540 = vadd.f32 %v314, %v1539
    %v1541 = vpop.f32.mrf.mxu0
    %1542 = vdwg.mxu0
    %1543 = vmatpush.bf16.msra.mxu0 0
    %1544 = vmatpush.bf16.msra.mxu0 0
    %1545 = vmatpush.bf16.msra.mxu0 0
    %1546 = vmatpush.bf16.msra.mxu0 0
    %1547 = vmatpush.bf16.msra.mxu0 0
    %1548 = vmatpush.bf16.msra.mxu0 0
    %1549 = vmatpush.bf16.msra.mxu0 %v891
    %1550 = vmatpush.bf16.msra.mxu0 %v827
    %1551 = vmatmul.bf16.gmra.mxu0 %v1047
    %v1552 = vpop.f32.mrf.mxu0
    %v1553 = vadd.f32 %v315, %v1552
    %v1554 = vpop.f32.mrf.mxu0
    %1555 = vdwg.mxu0
    %1556 = vmatpush.bf16.msra.mxu0 0
    %1557 = vmatpush.bf16.msra.mxu0 0
    %1558 = vmatpush.bf16.msra.mxu0 0
    %1559 = vmatpush.bf16.msra.mxu0 0
    %1560 = vmatpush.bf16.msra.mxu0 0
    %1561 = vmatpush.bf16.msra.mxu0 0
    %1562 = vmatpush.bf16.msra.mxu0 %v892
    %1563 = vmatpush.bf16.msra.mxu0 %v828
    %1564 = vmatmul.bf16.gmra.mxu0 %v1047
    %v1565 = vpop.f32.mrf.mxu0
    %v1566 = vadd.f32 %v316, %v1565
    %v1567 = vpop.f32.mrf.mxu0
    %1568 = vdwg.mxu0
    %1569 = vmatpush.bf16.msra.mxu0 0
    %1570 = vmatpush.bf16.msra.mxu0 0
    %1571 = vmatpush.bf16.msra.mxu0 0
    %1572 = vmatpush.bf16.msra.mxu0 0
    %1573 = vmatpush.bf16.msra.mxu0 0
    %1574 = vmatpush.bf16.msra.mxu0 0
    %1575 = vmatpush.bf16.msra.mxu0 %v893
    %1576 = vmatpush.bf16.msra.mxu0 %v829
    %1577 = vmatmul.bf16.gmra.mxu0 %v1047
    %v1578 = vpop.f32.mrf.mxu0
    %v1579 = vadd.f32 %v317, %v1578
    %v1580 = vpop.f32.mrf.mxu0
    %1581 = vdwg.mxu0
    %1582 = vmatpush.bf16.msra.mxu0 0
    %1583 = vmatpush.bf16.msra.mxu0 0
    %1584 = vmatpush.bf16.msra.mxu0 0
    %1585 = vmatpush.bf16.msra.mxu0 0
    %1586 = vmatpush.bf16.msra.mxu0 0
    %1587 = vmatpush.bf16.msra.mxu0 0
    %1588 = vmatpush.bf16.msra.mxu0 %v894
    %1589 = vmatpush.bf16.msra.mxu0 %v830
    %1590 = vmatmul.bf16.gmra.mxu0 %v1047
    %v1591 = vpop.f32.mrf.mxu0
    %v1592 = vadd.f32 %v318, %v1591
    %v1593 = vpop.f32.mrf.mxu0
    %1594 = vdwg.mxu0
    %1595 = vmatpush.bf16.msra.mxu0 0
    %1596 = vmatpush.bf16.msra.mxu0 0
    %1597 = vmatpush.bf16.msra.mxu0 0
    %1598 = vmatpush.bf16.msra.mxu0 0
    %1599 = vmatpush.bf16.msra.mxu0 0
    %1600 = vmatpush.bf16.msra.mxu0 0
    %1601 = vmatpush.bf16.msra.mxu0 %v895
    %1602 = vmatpush.bf16.msra.mxu0 %v831
    %1603 = vmatmul.bf16.gmra.mxu0 %v1047
    %v1604 = vpop.f32.mrf.mxu0
    %v1605 = vadd.f32 %v319, %v1604
    %v1606 = vpop.f32.mrf.mxu0
    %1607 = vdwg.mxu0
    %1608 = vmatpush.bf16.msra.mxu0 0
    %1609 = vmatpush.bf16.msra.mxu0 0
    %1610 = vmatpush.bf16.msra.mxu0 0
    %1611 = vmatpush.bf16.msra.mxu0 0
    %1612 = vmatpush.bf16.msra.mxu0 0
    %1613 = vmatpush.bf16.msra.mxu0 0
    %1614 = vmatpush.bf16.msra.mxu0 %v896
    %1615 = vmatpush.bf16.msra.mxu0 %v832
    %1616 = vmatmul.bf16.gmra.mxu0 %v1047
    %v1617 = vpop.f32.mrf.mxu0
    %v1618 = vadd.f32 %v320, %v1617
    %v1619 = vpop.f32.mrf.mxu0
    %1620 = vdwg.mxu0
    %1621 = vmatpush.bf16.msra.mxu0 0
    %1622 = vmatpush.bf16.msra.mxu0 0
    %1623 = vmatpush.bf16.msra.mxu0 0
    %1624 = vmatpush.bf16.msra.mxu0 0
    %1625 = vmatpush.bf16.msra.mxu0 0
    %1626 = vmatpush.bf16.msra.mxu0 0
    %1627 = vmatpush.bf16.msra.mxu0 %v897
    %1628 = vmatpush.bf16.msra.mxu0 %v833
    %1629 = vmatmul.bf16.gmra.mxu0 %v1047
    %v1630 = vpop.f32.mrf.mxu0
    %v1631 = vadd.f32 %v321, %v1630
    %v1632 = vpop.f32.mrf.mxu0
    %1633 = vdwg.mxu0
    %1634 = vmatpush.bf16.msra.mxu0 0
    %1635 = vmatpush.bf16.msra.mxu0 0
    %1636 = vmatpush.bf16.msra.mxu0 0
    %1637 = vmatpush.bf16.msra.mxu0 0
    %1638 = vmatpush.bf16.msra.mxu0 0
    %1639 = vmatpush.bf16.msra.mxu0 0
    %1640 = vmatpush.bf16.msra.mxu0 %v898
    %1641 = vmatpush.bf16.msra.mxu0 %v834
    %1642 = vmatmul.bf16.gmra.mxu0 %v1047
    %v1643 = vpop.f32.mrf.mxu0
    %v1644 = vadd.f32 %v322, %v1643
    %v1645 = vpop.f32.mrf.mxu0
    %1646 = vdwg.mxu0
    %1647 = vmatpush.bf16.msra.mxu0 0
    %1648 = vmatpush.bf16.msra.mxu0 0
    %1649 = vmatpush.bf16.msra.mxu0 0
    %1650 = vmatpush.bf16.msra.mxu0 0
    %1651 = vmatpush.bf16.msra.mxu0 0
    %1652 = vmatpush.bf16.msra.mxu0 0
    %1653 = vmatpush.bf16.msra.mxu0 %v899
    %1654 = vmatpush.bf16.msra.mxu0 %v835
    %1655 = vmatmul.bf16.gmra.mxu0 %v1047
    %v1656 = vpop.f32.mrf.mxu0
    %v1657 = vadd.f32 %v323, %v1656
    %v1658 = vpop.f32.mrf.mxu0
    %1659 = vdwg.mxu0
    %1660 = vmatpush.bf16.msra.mxu0 0
    %1661 = vmatpush.bf16.msra.mxu0 0
    %1662 = vmatpush.bf16.msra.mxu0 0
    %1663 = vmatpush.bf16.msra.mxu0 0
    %1664 = vmatpush.bf16.msra.mxu0 0
    %1665 = vmatpush.bf16.msra.mxu0 0
    %1666 = vmatpush.bf16.msra.mxu0 %v900
    %1667 = vmatpush.bf16.msra.mxu0 %v836
    %1668 = vmatmul.bf16.gmra.mxu0 %v1047
    %v1669 = vpop.f32.mrf.mxu0
    %v1670 = vadd.f32 %v324, %v1669
    %v1671 = vpop.f32.mrf.mxu0
    %1672 = vdwg.mxu0
    %1673 = vmatpush.bf16.msra.mxu0 0
    %1674 = vmatpush.bf16.msra.mxu0 0
    %1675 = vmatpush.bf16.msra.mxu0 0
    %1676 = vmatpush.bf16.msra.mxu0 0
    %1677 = vmatpush.bf16.msra.mxu0 0
    %1678 = vmatpush.bf16.msra.mxu0 0
    %1679 = vmatpush.bf16.msra.mxu0 %v901
    %1680 = vmatpush.bf16.msra.mxu0 %v837
    %1681 = vmatmul.bf16.gmra.mxu0 %v1047
    %v1682 = vpop.f32.mrf.mxu0
    %v1683 = vadd.f32 %v325, %v1682
    %v1684 = vpop.f32.mrf.mxu0
    %1685 = vdwg.mxu0
    %1686 = vmatpush.bf16.msra.mxu0 0
    %1687 = vmatpush.bf16.msra.mxu0 0
    %1688 = vmatpush.bf16.msra.mxu0 0
    %1689 = vmatpush.bf16.msra.mxu0 0
    %1690 = vmatpush.bf16.msra.mxu0 0
    %1691 = vmatpush.bf16.msra.mxu0 0
    %1692 = vmatpush.bf16.msra.mxu0 %v902
    %1693 = vmatpush.bf16.msra.mxu0 %v838
    %1694 = vmatmul.bf16.gmra.mxu0 %v1047
    %v1695 = vpop.f32.mrf.mxu0
    %v1696 = vadd.f32 %v326, %v1695
    %v1697 = vpop.f32.mrf.mxu0
    %1698 = vdwg.mxu0
    %1699 = vmatpush.bf16.msra.mxu0 0
    %1700 = vmatpush.bf16.msra.mxu0 0
    %1701 = vmatpush.bf16.msra.mxu0 0
    %1702 = vmatpush.bf16.msra.mxu0 0
    %1703 = vmatpush.bf16.msra.mxu0 0
    %1704 = vmatpush.bf16.msra.mxu0 0
    %1705 = vmatpush.bf16.msra.mxu0 %v903
    %1706 = vmatpush.bf16.msra.mxu0 %v839
    %1707 = vmatmul.bf16.gmra.mxu0 %v1047
    %v1708 = vpop.f32.mrf.mxu0
    %v1709 = vadd.f32 %v327, %v1708
    %v1710 = vpop.f32.mrf.mxu0
    %1711 = vdwg.mxu0
    %1712 = vmatpush.bf16.msra.mxu0 0
    %1713 = vmatpush.bf16.msra.mxu0 0
    %1714 = vmatpush.bf16.msra.mxu0 0
    %1715 = vmatpush.bf16.msra.mxu0 0
    %1716 = vmatpush.bf16.msra.mxu0 0
    %1717 = vmatpush.bf16.msra.mxu0 0
    %1718 = vmatpush.bf16.msra.mxu0 %v904
    %1719 = vmatpush.bf16.msra.mxu0 %v840
    %1720 = vmatmul.bf16.gmra.mxu0 %v1047
    %v1721 = vpop.f32.mrf.mxu0
    %v1722 = vadd.f32 %v328, %v1721
    %v1723 = vpop.f32.mrf.mxu0
    %1724 = vdwg.mxu0
    %1725 = vmatpush.bf16.msra.mxu0 0
    %1726 = vmatpush.bf16.msra.mxu0 0
    %1727 = vmatpush.bf16.msra.mxu0 0
    %1728 = vmatpush.bf16.msra.mxu0 0
    %1729 = vmatpush.bf16.msra.mxu0 0
    %1730 = vmatpush.bf16.msra.mxu0 0
    %1731 = vmatpush.bf16.msra.mxu0 %v905
    %1732 = vmatpush.bf16.msra.mxu0 %v841
    %1733 = vmatmul.bf16.gmra.mxu0 %v1047
    %v1734 = vpop.f32.mrf.mxu0
    %v1735 = vadd.f32 %v329, %v1734
    %v1736 = vpop.f32.mrf.mxu0
    %1737 = vdwg.mxu0
    %1738 = vmatpush.bf16.msra.mxu0 0
    %1739 = vmatpush.bf16.msra.mxu0 0
    %1740 = vmatpush.bf16.msra.mxu0 0
    %1741 = vmatpush.bf16.msra.mxu0 0
    %1742 = vmatpush.bf16.msra.mxu0 0
    %1743 = vmatpush.bf16.msra.mxu0 0
    %1744 = vmatpush.bf16.msra.mxu0 %v906
    %1745 = vmatpush.bf16.msra.mxu0 %v842
    %1746 = vmatmul.bf16.gmra.mxu0 %v1047
    %v1747 = vpop.f32.mrf.mxu0
    %v1748 = vadd.f32 %v330, %v1747
    %v1749 = vpop.f32.mrf.mxu0
    %1750 = vdwg.mxu0
    %1751 = vmatpush.bf16.msra.mxu0 0
    %1752 = vmatpush.bf16.msra.mxu0 0
    %1753 = vmatpush.bf16.msra.mxu0 0
    %1754 = vmatpush.bf16.msra.mxu0 0
    %1755 = vmatpush.bf16.msra.mxu0 0
    %1756 = vmatpush.bf16.msra.mxu0 0
    %1757 = vmatpush.bf16.msra.mxu0 %v907
    %1758 = vmatpush.bf16.msra.mxu0 %v843
    %1759 = vmatmul.bf16.gmra.mxu0 %v1047
    %v1760 = vpop.f32.mrf.mxu0
    %v1761 = vadd.f32 %v331, %v1760
    %v1762 = vpop.f32.mrf.mxu0
    %1763 = vdwg.mxu0
    %1764 = vmatpush.bf16.msra.mxu0 0
    %1765 = vmatpush.bf16.msra.mxu0 0
    %1766 = vmatpush.bf16.msra.mxu0 0
    %1767 = vmatpush.bf16.msra.mxu0 0
    %1768 = vmatpush.bf16.msra.mxu0 0
    %1769 = vmatpush.bf16.msra.mxu0 0
    %1770 = vmatpush.bf16.msra.mxu0 %v908
    %1771 = vmatpush.bf16.msra.mxu0 %v844
    %1772 = vmatmul.bf16.gmra.mxu0 %v1047
    %v1773 = vpop.f32.mrf.mxu0
    %v1774 = vadd.f32 %v332, %v1773
    %v1775 = vpop.f32.mrf.mxu0
    %1776 = vdwg.mxu0
    %1777 = vmatpush.bf16.msra.mxu0 0
    %1778 = vmatpush.bf16.msra.mxu0 0
    %1779 = vmatpush.bf16.msra.mxu0 0
    %1780 = vmatpush.bf16.msra.mxu0 0
    %1781 = vmatpush.bf16.msra.mxu0 0
    %1782 = vmatpush.bf16.msra.mxu0 0
    %1783 = vmatpush.bf16.msra.mxu0 %v909
    %1784 = vmatpush.bf16.msra.mxu0 %v845
    %1785 = vmatmul.bf16.gmra.mxu0 %v1047
    %v1786 = vpop.f32.mrf.mxu0
    %v1787 = vadd.f32 %v333, %v1786
    %v1788 = vpop.f32.mrf.mxu0
    %1789 = vdwg.mxu0
    %1790 = vmatpush.bf16.msra.mxu0 0
    %1791 = vmatpush.bf16.msra.mxu0 0
    %1792 = vmatpush.bf16.msra.mxu0 0
    %1793 = vmatpush.bf16.msra.mxu0 0
    %1794 = vmatpush.bf16.msra.mxu0 0
    %1795 = vmatpush.bf16.msra.mxu0 0
    %1796 = vmatpush.bf16.msra.mxu0 %v910
    %1797 = vmatpush.bf16.msra.mxu0 %v846
    %1798 = vmatmul.bf16.gmra.mxu0 %v1047
    %v1799 = vpop.f32.mrf.mxu0
    %v1800 = vadd.f32 %v334, %v1799
    %v1801 = vpop.f32.mrf.mxu0
    %1802 = vdwg.mxu0
    %1803 = vmatpush.bf16.msra.mxu0 0
    %1804 = vmatpush.bf16.msra.mxu0 0
    %1805 = vmatpush.bf16.msra.mxu0 0
    %1806 = vmatpush.bf16.msra.mxu0 0
    %1807 = vmatpush.bf16.msra.mxu0 0
    %1808 = vmatpush.bf16.msra.mxu0 0
    %1809 = vmatpush.bf16.msra.mxu0 %v911
    %1810 = vmatpush.bf16.msra.mxu0 %v847
    %1811 = vmatmul.bf16.gmra.mxu0 %v1047
    %v1812 = vpop.f32.mrf.mxu0
    %v1813 = vadd.f32 %v335, %v1812
    %v1814 = vpop.f32.mrf.mxu0
    %1815 = vdwg.mxu0
    %1816 = vmatpush.bf16.msra.mxu0 0
    %1817 = vmatpush.bf16.msra.mxu0 0
    %1818 = vmatpush.bf16.msra.mxu0 0
    %1819 = vmatpush.bf16.msra.mxu0 0
    %1820 = vmatpush.bf16.msra.mxu0 0
    %1821 = vmatpush.bf16.msra.mxu0 0
    %1822 = vmatpush.bf16.msra.mxu0 %v912
    %1823 = vmatpush.bf16.msra.mxu0 %v848
    %1824 = vmatmul.bf16.gmra.mxu0 %v1047
    %v1825 = vpop.f32.mrf.mxu0
    %v1826 = vadd.f32 %v336, %v1825
    %v1827 = vpop.f32.mrf.mxu0
    %1828 = vdwg.mxu0
    %1829 = vmatpush.bf16.msra.mxu0 0
    %1830 = vmatpush.bf16.msra.mxu0 0
    %1831 = vmatpush.bf16.msra.mxu0 0
    %1832 = vmatpush.bf16.msra.mxu0 0
    %1833 = vmatpush.bf16.msra.mxu0 0
    %1834 = vmatpush.bf16.msra.mxu0 0
    %1835 = vmatpush.bf16.msra.mxu0 %v913
    %1836 = vmatpush.bf16.msra.mxu0 %v849
    %1837 = vmatmul.bf16.gmra.mxu0 %v1047
    %v1838 = vpop.f32.mrf.mxu0
    %v1839 = vadd.f32 %v337, %v1838
    %v1840 = vpop.f32.mrf.mxu0
    %1841 = vdwg.mxu0
    %1842 = vmatpush.bf16.msra.mxu0 0
    %1843 = vmatpush.bf16.msra.mxu0 0
    %1844 = vmatpush.bf16.msra.mxu0 0
    %1845 = vmatpush.bf16.msra.mxu0 0
    %1846 = vmatpush.bf16.msra.mxu0 0
    %1847 = vmatpush.bf16.msra.mxu0 0
    %1848 = vmatpush.bf16.msra.mxu0 %v914
    %1849 = vmatpush.bf16.msra.mxu0 %v850
    %1850 = vmatmul.bf16.gmra.mxu0 %v1047
    %v1851 = vpop.f32.mrf.mxu0
    %v1852 = vadd.f32 %v338, %v1851
    %v1853 = vpop.f32.mrf.mxu0
    %1854 = vdwg.mxu0
    %1855 = vmatpush.bf16.msra.mxu0 0
    %1856 = vmatpush.bf16.msra.mxu0 0
    %1857 = vmatpush.bf16.msra.mxu0 0
    %1858 = vmatpush.bf16.msra.mxu0 0
    %1859 = vmatpush.bf16.msra.mxu0 0
    %1860 = vmatpush.bf16.msra.mxu0 0
    %1861 = vmatpush.bf16.msra.mxu0 %v915
    %1862 = vmatpush.bf16.msra.mxu0 %v851
    %1863 = vmatmul.bf16.gmra.mxu0 %v1047
    %v1864 = vpop.f32.mrf.mxu0
    %v1865 = vadd.f32 %v339, %v1864
    %v1866 = vpop.f32.mrf.mxu0
    %1867 = vdwg.mxu0
    %1868 = vmatpush.bf16.msra.mxu0 0
    %1869 = vmatpush.bf16.msra.mxu0 0
    %1870 = vmatpush.bf16.msra.mxu0 0
    %1871 = vmatpush.bf16.msra.mxu0 0
    %1872 = vmatpush.bf16.msra.mxu0 0
    %1873 = vmatpush.bf16.msra.mxu0 0
    %1874 = vmatpush.bf16.msra.mxu0 %v916
    %1875 = vmatpush.bf16.msra.mxu0 %v852
    %1876 = vmatmul.bf16.gmra.mxu0 %v1047
    %v1877 = vpop.f32.mrf.mxu0
    %v1878 = vadd.f32 %v340, %v1877
    %v1879 = vpop.f32.mrf.mxu0
    %1880 = vdwg.mxu0
    %v1881 = vmax.f32 %v1059, 0.0
    %v1882 = vmax.f32 %v1072, 0.0
    %v1883 = vmax.f32 %v1085, 0.0
    %v1884 = vmax.f32 %v1098, 0.0
    %v1885 = vmax.f32 %v1111, 0.0
    %v1886 = vmax.f32 %v1124, 0.0
    %v1887 = vmax.f32 %v1137, 0.0
    %v1888 = vmax.f32 %v1150, 0.0
    %v1889 = vmax.f32 %v1163, 0.0
    %v1890 = vmax.f32 %v1176, 0.0
    %v1891 = vmax.f32 %v1189, 0.0
    %v1892 = vmax.f32 %v1202, 0.0
    %v1893 = vmax.f32 %v1215, 0.0
    %v1894 = vmax.f32 %v1228, 0.0
    %v1895 = vmax.f32 %v1241, 0.0
    %v1896 = vmax.f32 %v1254, 0.0
    %v1897 = vmax.f32 %v1267, 0.0
    %v1898 = vmax.f32 %v1280, 0.0
    %v1899 = vmax.f32 %v1293, 0.0
    %v1900 = vmax.f32 %v1306, 0.0
    %v1901 = vmax.f32 %v1319, 0.0
    %v1902 = vmax.f32 %v1332, 0.0
    %v1903 = vmax.f32 %v1345, 0.0
    %v1904 = vmax.f32 %v1358, 0.0
    %v1905 = vmax.f32 %v1371, 0.0
    %v1906 = vmax.f32 %v1384, 0.0
    %v1907 = vmax.f32 %v1397, 0.0
    %v1908 = vmax.f32 %v1410, 0.0
    %v1909 = vmax.f32 %v1423, 0.0
    %v1910 = vmax.f32 %v1436, 0.0
    %v1911 = vmax.f32 %v1449, 0.0
    %v1912 = vmax.f32 %v1462, 0.0
    %v1913 = vmax.f32 %v1475, 0.0
    %v1914 = vmax.f32 %v1488, 0.0
    %v1915 = vmax.f32 %v1501, 0.0
    %v1916 = vmax.f32 %v1514, 0.0
    %v1917 = vmax.f32 %v1527, 0.0
    %v1918 = vmax.f32 %v1540, 0.0
    %v1919 = vmax.f32 %v1553, 0.0
    %v1920 = vmax.f32 %v1566, 0.0
    %v1921 = vmax.f32 %v1579, 0.0
    %v1922 = vmax.f32 %v1592, 0.0
    %v1923 = vmax.f32 %v1605, 0.0
    %v1924 = vmax.f32 %v1618, 0.0
    %v1925 = vmax.f32 %v1631, 0.0
    %v1926 = vmax.f32 %v1644, 0.0
    %v1927 = vmax.f32 %v1657, 0.0
    %v1928 = vmax.f32 %v1670, 0.0
    %v1929 = vmax.f32 %v1683, 0.0
    %v1930 = vmax.f32 %v1696, 0.0
    %v1931 = vmax.f32 %v1709, 0.0
    %v1932 = vmax.f32 %v1722, 0.0
    %v1933 = vmax.f32 %v1735, 0.0
    %v1934 = vmax.f32 %v1748, 0.0
    %v1935 = vmax.f32 %v1761, 0.0
    %v1936 = vmax.f32 %v1774, 0.0
    %v1937 = vmax.f32 %v1787, 0.0
    %v1938 = vmax.f32 %v1800, 0.0
    %v1939 = vmax.f32 %v1813, 0.0
    %v1940 = vmax.f32 %v1826, 0.0
    %v1941 = vmax.f32 %v1839, 0.0
    %v1942 = vmax.f32 %v1852, 0.0
    %v1943 = vmax.f32 %v1865, 0.0
    %v1944 = vmax.f32 %v1878, 0.0
    %v1945 = vpack.c.bf16 %v1881, %v1881
    %v1946 = vpack.c.bf16 %v1882, %v1882
    %v1947 = vpack.c.bf16 %v1883, %v1883
    %v1948 = vpack.c.bf16 %v1884, %v1884
    %v1949 = vpack.c.bf16 %v1885, %v1885
    %v1950 = vpack.c.bf16 %v1886, %v1886
    %v1951 = vpack.c.bf16 %v1887, %v1887
    %v1952 = vpack.c.bf16 %v1888, %v1888
    %v1953 = vpack.c.bf16 %v1889, %v1889
    %v1954 = vpack.c.bf16 %v1890, %v1890
    %v1955 = vpack.c.bf16 %v1891, %v1891
    %v1956 = vpack.c.bf16 %v1892, %v1892
    %v1957 = vpack.c.bf16 %v1893, %v1893
    %v1958 = vpack.c.bf16 %v1894, %v1894
    %v1959 = vpack.c.bf16 %v1895, %v1895
    %v1960 = vpack.c.bf16 %v1896, %v1896
    %v1961 = vpack.c.bf16 %v1897, %v1897
    %v1962 = vpack.c.bf16 %v1898, %v1898
    %v1963 = vpack.c.bf16 %v1899, %v1899
    %v1964 = vpack.c.bf16 %v1900, %v1900
    %v1965 = vpack.c.bf16 %v1901, %v1901
    %v1966 = vpack.c.bf16 %v1902, %v1902
    %v1967 = vpack.c.bf16 %v1903, %v1903
    %v1968 = vpack.c.bf16 %v1904, %v1904
    %v1969 = vpack.c.bf16 %v1905, %v1905
    %v1970 = vpack.c.bf16 %v1906, %v1906
    %v1971 = vpack.c.bf16 %v1907, %v1907
    %v1972 = vpack.c.bf16 %v1908, %v1908
    %v1973 = vpack.c.bf16 %v1909, %v1909
    %v1974 = vpack.c.bf16 %v1910, %v1910
    %v1975 = vpack.c.bf16 %v1911, %v1911
    %v1976 = vpack.c.bf16 %v1912, %v1912
    %v1977 = vpack.c.bf16 %v1913, %v1913
    %v1978 = vpack.c.bf16 %v1914, %v1914
    %v1979 = vpack.c.bf16 %v1915, %v1915
    %v1980 = vpack.c.bf16 %v1916, %v1916
    %v1981 = vpack.c.bf16 %v1917, %v1917
    %v1982 = vpack.c.bf16 %v1918, %v1918
    %v1983 = vpack.c.bf16 %v1919, %v1919
    %v1984 = vpack.c.bf16 %v1920, %v1920
    %v1985 = vpack.c.bf16 %v1921, %v1921
    %v1986 = vpack.c.bf16 %v1922, %v1922
    %v1987 = vpack.c.bf16 %v1923, %v1923
    %v1988 = vpack.c.bf16 %v1924, %v1924
    %v1989 = vpack.c.bf16 %v1925, %v1925
    %v1990 = vpack.c.bf16 %v1926, %v1926
    %v1991 = vpack.c.bf16 %v1927, %v1927
    %v1992 = vpack.c.bf16 %v1928, %v1928
    %v1993 = vpack.c.bf16 %v1929, %v1929
    %v1994 = vpack.c.bf16 %v1930, %v1930
    %v1995 = vpack.c.bf16 %v1931, %v1931
    %v1996 = vpack.c.bf16 %v1932, %v1932
    %v1997 = vpack.c.bf16 %v1933, %v1933
    %v1998 = vpack.c.bf16 %v1934, %v1934
    %v1999 = vpack.c.bf16 %v1935, %v1935
    %v2000 = vpack.c.bf16 %v1936, %v1936
    %v2001 = vpack.c.bf16 %v1937, %v1937
    %v2002 = vpack.c.bf16 %v1938, %v1938
    %v2003 = vpack.c.bf16 %v1939, %v1939
    %v2004 = vpack.c.bf16 %v1940, %v1940
    %v2005 = vpack.c.bf16 %v1941, %v1941
    %v2006 = vpack.c.bf16 %v1942, %v1942
    %v2007 = vpack.c.bf16 %v1943, %v1943
    %v2008 = vpack.c.bf16 %v1944, %v1944
    %v2009 = vperm.slane %v266, 0
    %v2074 = vunpack.c.l.b16 %v187
    %v2075 = vunpack.c.h.b16 %v187
    %v2076 = vunpack.c.l.b16 %v188
    %v2077 = vunpack.c.h.b16 %v188
    %v2078 = vunpack.c.l.b16 %v189
    %v2079 = vunpack.c.h.b16 %v189
    %v2080 = vunpack.c.l.b16 %v190
    %v2081 = vunpack.c.h.b16 %v190
    %v2082 = vunpack.c.l.b16 %v191
    %v2083 = vunpack.c.h.b16 %v191
    %v2084 = vunpack.c.l.b16 %v192
    %v2085 = vunpack.c.h.b16 %v192
    %v2086 = vunpack.c.l.b16 %v193
    %v2087 = vunpack.c.h.b16 %v193
    %v2088 = vunpack.c.l.b16 %v194
    %v2089 = vunpack.c.h.b16 %v194
    %v2090 = vunpack.c.l.b16 %v195
    %v2091 = vunpack.c.h.b16 %v195
    %v2092 = vunpack.c.l.b16 %v196
    %v2093 = vunpack.c.h.b16 %v196
    %v2094 = vunpack.c.l.b16 %v197
    %v2095 = vunpack.c.h.b16 %v197
    %v2096 = vunpack.c.l.b16 %v198
    %v2097 = vunpack.c.h.b16 %v198
    %v2098 = vunpack.c.l.b16 %v199
    %v2099 = vunpack.c.h.b16 %v199
    %v2100 = vunpack.c.l.b16 %v200
    %v2101 = vunpack.c.h.b16 %v200
    %v2102 = vunpack.c.l.b16 %v201
    %v2103 = vunpack.c.h.b16 %v201
    %v2104 = vunpack.c.l.b16 %v202
    %v2105 = vunpack.c.h.b16 %v202
    %v2106 = vunpack.c.l.b16 %v203
    %v2107 = vunpack.c.h.b16 %v203
    %v2108 = vunpack.c.l.b16 %v204
    %v2109 = vunpack.c.h.b16 %v204
    %v2110 = vunpack.c.l.b16 %v205
    %v2111 = vunpack.c.h.b16 %v205
    %v2112 = vunpack.c.l.b16 %v206
    %v2113 = vunpack.c.h.b16 %v206
    %v2114 = vunpack.c.l.b16 %v207
    %v2115 = vunpack.c.h.b16 %v207
    %v2116 = vunpack.c.l.b16 %v208
    %v2117 = vunpack.c.h.b16 %v208
    %v2118 = vunpack.c.l.b16 %v209
    %v2119 = vunpack.c.h.b16 %v209
    %v2120 = vunpack.c.l.b16 %v210
    %v2121 = vunpack.c.h.b16 %v210
    %v2122 = vunpack.c.l.b16 %v211
    %v2123 = vunpack.c.h.b16 %v211
    %v2124 = vunpack.c.l.b16 %v212
    %v2125 = vunpack.c.h.b16 %v212
    %v2126 = vunpack.c.l.b16 %v213
    %v2127 = vunpack.c.h.b16 %v213
    %v2128 = vunpack.c.l.b16 %v214
    %v2129 = vunpack.c.h.b16 %v214
    %v2130 = vunpack.c.l.b16 %v215
    %v2131 = vunpack.c.h.b16 %v215
    %v2132 = vunpack.c.l.b16 %v216
    %v2133 = vunpack.c.h.b16 %v216
    %v2134 = vunpack.c.l.b16 %v217
    %v2135 = vunpack.c.h.b16 %v217
    %v2136 = vunpack.c.l.b16 %v218
    %v2137 = vunpack.c.h.b16 %v218
    %v2138 = vunpack.c.l.b16 %v219
    %v2139 = vunpack.c.h.b16 %v219
    %v2140 = vunpack.c.l.b16 %v220
    %v2141 = vunpack.c.h.b16 %v220
    %v2142 = vunpack.c.l.b16 %v221
    %v2143 = vunpack.c.h.b16 %v221
    %v2144 = vunpack.c.l.b16 %v222
    %v2145 = vunpack.c.h.b16 %v222
    %v2146 = vunpack.c.l.b16 %v223
    %v2147 = vunpack.c.h.b16 %v223
    %v2148 = vunpack.c.l.b16 %v224
    %v2149 = vunpack.c.h.b16 %v224
    %v2150 = vunpack.c.l.b16 %v225
    %v2151 = vunpack.c.h.b16 %v225
    %v2152 = vunpack.c.l.b16 %v226
    %v2153 = vunpack.c.h.b16 %v226
    %v2154 = vunpack.c.l.b16 %v227
    %v2155 = vunpack.c.h.b16 %v227
    %v2156 = vunpack.c.l.b16 %v228
    %v2157 = vunpack.c.h.b16 %v228
    %v2158 = vunpack.c.l.b16 %v229
    %v2159 = vunpack.c.h.b16 %v229
    %v2160 = vunpack.c.l.b16 %v230
    %v2161 = vunpack.c.h.b16 %v230
    %v2162 = vunpack.c.l.b16 %v231
    %v2163 = vunpack.c.h.b16 %v231
    %v2164 = vunpack.c.l.b16 %v232
    %v2165 = vunpack.c.h.b16 %v232
    %v2166 = vunpack.c.l.b16 %v233
    %v2167 = vunpack.c.h.b16 %v233
    %v2168 = vunpack.c.l.b16 %v234
    %v2169 = vunpack.c.h.b16 %v234
    %v2170 = vunpack.c.l.b16 %v235
    %v2171 = vunpack.c.h.b16 %v235
    %v2172 = vunpack.c.l.b16 %v236
    %v2173 = vunpack.c.h.b16 %v236
    %v2174 = vunpack.c.l.b16 %v237
    %v2175 = vunpack.c.h.b16 %v237
    %v2176 = vunpack.c.l.b16 %v238
    %v2177 = vunpack.c.h.b16 %v238
    %v2178 = vunpack.c.l.b16 %v239
    %v2179 = vunpack.c.h.b16 %v239
    %v2180 = vunpack.c.l.b16 %v240
    %v2181 = vunpack.c.h.b16 %v240
    %v2182 = vunpack.c.l.b16 %v241
    %v2183 = vunpack.c.h.b16 %v241
    %v2184 = vunpack.c.l.b16 %v242
    %v2185 = vunpack.c.h.b16 %v242
    %v2186 = vunpack.c.l.b16 %v243
    %v2187 = vunpack.c.h.b16 %v243
    %v2188 = vunpack.c.l.b16 %v244
    %v2189 = vunpack.c.h.b16 %v244
    %v2190 = vunpack.c.l.b16 %v245
    %v2191 = vunpack.c.h.b16 %v245
    %v2192 = vunpack.c.l.b16 %v246
    %v2193 = vunpack.c.h.b16 %v246
    %v2194 = vunpack.c.l.b16 %v247
    %v2195 = vunpack.c.h.b16 %v247
    %v2196 = vunpack.c.l.b16 %v248
    %v2197 = vunpack.c.h.b16 %v248
    %v2198 = vunpack.c.l.b16 %v249
    %v2199 = vunpack.c.h.b16 %v249
    %v2200 = vunpack.c.l.b16 %v250
    %v2201 = vunpack.c.h.b16 %v250
    %v2202 = vpack.c.b16 %v2138, %v2074
    %v2203 = vpack.c.b16 %v2139, %v2075
    %v2204 = vpack.c.b16 %v2140, %v2076
    %v2205 = vpack.c.b16 %v2141, %v2077
    %v2206 = vpack.c.b16 %v2142, %v2078
    %v2207 = vpack.c.b16 %v2143, %v2079
    %v2208 = vpack.c.b16 %v2144, %v2080
    %v2209 = vpack.c.b16 %v2145, %v2081
    %v2210 = vpack.c.b16 %v2146, %v2082
    %v2211 = vpack.c.b16 %v2147, %v2083
    %v2212 = vpack.c.b16 %v2148, %v2084
    %v2213 = vpack.c.b16 %v2149, %v2085
    %v2214 = vpack.c.b16 %v2150, %v2086
    %v2215 = vpack.c.b16 %v2151, %v2087
    %v2216 = vpack.c.b16 %v2152, %v2088
    %v2217 = vpack.c.b16 %v2153, %v2089
    %v2218 = vpack.c.b16 %v2154, %v2090
    %v2219 = vpack.c.b16 %v2155, %v2091
    %v2220 = vpack.c.b16 %v2156, %v2092
    %v2221 = vpack.c.b16 %v2157, %v2093
    %v2222 = vpack.c.b16 %v2158, %v2094
    %v2223 = vpack.c.b16 %v2159, %v2095
    %v2224 = vpack.c.b16 %v2160, %v2096
    %v2225 = vpack.c.b16 %v2161, %v2097
    %v2226 = vpack.c.b16 %v2162, %v2098
    %v2227 = vpack.c.b16 %v2163, %v2099
    %v2228 = vpack.c.b16 %v2164, %v2100
    %v2229 = vpack.c.b16 %v2165, %v2101
    %v2230 = vpack.c.b16 %v2166, %v2102
    %v2231 = vpack.c.b16 %v2167, %v2103
    %v2232 = vpack.c.b16 %v2168, %v2104
    %v2233 = vpack.c.b16 %v2169, %v2105
    %v2234 = vpack.c.b16 %v2170, %v2106
    %v2235 = vpack.c.b16 %v2171, %v2107
    %v2236 = vpack.c.b16 %v2172, %v2108
    %v2237 = vpack.c.b16 %v2173, %v2109
    %v2238 = vpack.c.b16 %v2174, %v2110
    %v2239 = vpack.c.b16 %v2175, %v2111
    %v2240 = vpack.c.b16 %v2176, %v2112
    %v2241 = vpack.c.b16 %v2177, %v2113
    %v2242 = vpack.c.b16 %v2178, %v2114
    %v2243 = vpack.c.b16 %v2179, %v2115
    %v2244 = vpack.c.b16 %v2180, %v2116
    %v2245 = vpack.c.b16 %v2181, %v2117
    %v2246 = vpack.c.b16 %v2182, %v2118
    %v2247 = vpack.c.b16 %v2183, %v2119
    %v2248 = vpack.c.b16 %v2184, %v2120
    %v2249 = vpack.c.b16 %v2185, %v2121
    %v2250 = vpack.c.b16 %v2186, %v2122
    %v2251 = vpack.c.b16 %v2187, %v2123
    %v2252 = vpack.c.b16 %v2188, %v2124
    %v2253 = vpack.c.b16 %v2189, %v2125
    %v2254 = vpack.c.b16 %v2190, %v2126
    %v2255 = vpack.c.b16 %v2191, %v2127
    %v2256 = vpack.c.b16 %v2192, %v2128
    %v2257 = vpack.c.b16 %v2193, %v2129
    %v2258 = vpack.c.b16 %v2194, %v2130
    %v2259 = vpack.c.b16 %v2195, %v2131
    %v2260 = vpack.c.b16 %v2196, %v2132
    %v2261 = vpack.c.b16 %v2197, %v2133
    %v2262 = vpack.c.b16 %v2198, %v2134
    %v2263 = vpack.c.b16 %v2199, %v2135
    %v2264 = vpack.c.b16 %v2200, %v2136
    %v2265 = vpack.c.b16 %v2201, %v2137
    %2330 = vmatpush.bf16.xpose.msra.mxu0 0
    %2331 = vmatpush.bf16.xpose.msra.mxu0 0
    %2332 = vmatpush.bf16.xpose.msra.mxu0 0
    %2333 = vmatpush.bf16.xpose.msra.mxu0 0
    %2334 = vmatpush.bf16.xpose.msra.mxu0 0
    %2335 = vmatpush.bf16.xpose.msra.mxu0 0
    %2336 = vmatpush.bf16.xpose.msra.mxu0 0
    %2337 = vmatpush.bf16.xpose.msra.mxu0 %v2202
    %2338 = vmatmul.bf16.gmra.mxu0 %v1945
    %v2339 = vpop.f32.mrf.mxu0
    %v2340 = vadd.f32 %v2009, %v2339
    %v2341 = vpop.f32.mrf.mxu0
    %2342 = vdwg.mxu0
    %2343 = vmatpush.bf16.xpose.msra.mxu0 0
    %2344 = vmatpush.bf16.xpose.msra.mxu0 0
    %2345 = vmatpush.bf16.xpose.msra.mxu0 0
    %2346 = vmatpush.bf16.xpose.msra.mxu0 0
    %2347 = vmatpush.bf16.xpose.msra.mxu0 0
    %2348 = vmatpush.bf16.xpose.msra.mxu0 0
    %2349 = vmatpush.bf16.xpose.msra.mxu0 0
    %2350 = vmatpush.bf16.xpose.msra.mxu0 %v2203
    %2351 = vmatmul.bf16.gmra.mxu0 %v1946
    %v2352 = vpop.f32.mrf.mxu0
    %v2353 = vadd.f32 %v2340, %v2352
    %v2354 = vpop.f32.mrf.mxu0
    %2355 = vdwg.mxu0
    %2356 = vmatpush.bf16.xpose.msra.mxu0 0
    %2357 = vmatpush.bf16.xpose.msra.mxu0 0
    %2358 = vmatpush.bf16.xpose.msra.mxu0 0
    %2359 = vmatpush.bf16.xpose.msra.mxu0 0
    %2360 = vmatpush.bf16.xpose.msra.mxu0 0
    %2361 = vmatpush.bf16.xpose.msra.mxu0 0
    %2362 = vmatpush.bf16.xpose.msra.mxu0 0
    %2363 = vmatpush.bf16.xpose.msra.mxu0 %v2204
    %2364 = vmatmul.bf16.gmra.mxu0 %v1947
    %v2365 = vpop.f32.mrf.mxu0
    %v2366 = vadd.f32 %v2353, %v2365
    %v2367 = vpop.f32.mrf.mxu0
    %2368 = vdwg.mxu0
    %2369 = vmatpush.bf16.xpose.msra.mxu0 0
    %2370 = vmatpush.bf16.xpose.msra.mxu0 0
    %2371 = vmatpush.bf16.xpose.msra.mxu0 0
    %2372 = vmatpush.bf16.xpose.msra.mxu0 0
    %2373 = vmatpush.bf16.xpose.msra.mxu0 0
    %2374 = vmatpush.bf16.xpose.msra.mxu0 0
    %2375 = vmatpush.bf16.xpose.msra.mxu0 0
    %2376 = vmatpush.bf16.xpose.msra.mxu0 %v2205
    %2377 = vmatmul.bf16.gmra.mxu0 %v1948
    %v2378 = vpop.f32.mrf.mxu0
    %v2379 = vadd.f32 %v2366, %v2378
    %v2380 = vpop.f32.mrf.mxu0
    %2381 = vdwg.mxu0
    %2382 = vmatpush.bf16.xpose.msra.mxu0 0
    %2383 = vmatpush.bf16.xpose.msra.mxu0 0
    %2384 = vmatpush.bf16.xpose.msra.mxu0 0
    %2385 = vmatpush.bf16.xpose.msra.mxu0 0
    %2386 = vmatpush.bf16.xpose.msra.mxu0 0
    %2387 = vmatpush.bf16.xpose.msra.mxu0 0
    %2388 = vmatpush.bf16.xpose.msra.mxu0 0
    %2389 = vmatpush.bf16.xpose.msra.mxu0 %v2206
    %2390 = vmatmul.bf16.gmra.mxu0 %v1949
    %v2391 = vpop.f32.mrf.mxu0
    %v2392 = vadd.f32 %v2379, %v2391
    %v2393 = vpop.f32.mrf.mxu0
    %2394 = vdwg.mxu0
    %2395 = vmatpush.bf16.xpose.msra.mxu0 0
    %2396 = vmatpush.bf16.xpose.msra.mxu0 0
    %2397 = vmatpush.bf16.xpose.msra.mxu0 0
    %2398 = vmatpush.bf16.xpose.msra.mxu0 0
    %2399 = vmatpush.bf16.xpose.msra.mxu0 0
    %2400 = vmatpush.bf16.xpose.msra.mxu0 0
    %2401 = vmatpush.bf16.xpose.msra.mxu0 0
    %2402 = vmatpush.bf16.xpose.msra.mxu0 %v2207
    %2403 = vmatmul.bf16.gmra.mxu0 %v1950
    %v2404 = vpop.f32.mrf.mxu0
    %v2405 = vadd.f32 %v2392, %v2404
    %v2406 = vpop.f32.mrf.mxu0
    %2407 = vdwg.mxu0
    %2408 = vmatpush.bf16.xpose.msra.mxu0 0
    %2409 = vmatpush.bf16.xpose.msra.mxu0 0
    %2410 = vmatpush.bf16.xpose.msra.mxu0 0
    %2411 = vmatpush.bf16.xpose.msra.mxu0 0
    %2412 = vmatpush.bf16.xpose.msra.mxu0 0
    %2413 = vmatpush.bf16.xpose.msra.mxu0 0
    %2414 = vmatpush.bf16.xpose.msra.mxu0 0
    %2415 = vmatpush.bf16.xpose.msra.mxu0 %v2208
    %2416 = vmatmul.bf16.gmra.mxu0 %v1951
    %v2417 = vpop.f32.mrf.mxu0
    %v2418 = vadd.f32 %v2405, %v2417
    %v2419 = vpop.f32.mrf.mxu0
    %2420 = vdwg.mxu0
    %2421 = vmatpush.bf16.xpose.msra.mxu0 0
    %2422 = vmatpush.bf16.xpose.msra.mxu0 0
    %2423 = vmatpush.bf16.xpose.msra.mxu0 0
    %2424 = vmatpush.bf16.xpose.msra.mxu0 0
    %2425 = vmatpush.bf16.xpose.msra.mxu0 0
    %2426 = vmatpush.bf16.xpose.msra.mxu0 0
    %2427 = vmatpush.bf16.xpose.msra.mxu0 0
    %2428 = vmatpush.bf16.xpose.msra.mxu0 %v2209
    %2429 = vmatmul.bf16.gmra.mxu0 %v1952
    %v2430 = vpop.f32.mrf.mxu0
    %v2431 = vadd.f32 %v2418, %v2430
    %v2432 = vpop.f32.mrf.mxu0
    %2433 = vdwg.mxu0
    %2434 = vmatpush.bf16.xpose.msra.mxu0 0
    %2435 = vmatpush.bf16.xpose.msra.mxu0 0
    %2436 = vmatpush.bf16.xpose.msra.mxu0 0
    %2437 = vmatpush.bf16.xpose.msra.mxu0 0
    %2438 = vmatpush.bf16.xpose.msra.mxu0 0
    %2439 = vmatpush.bf16.xpose.msra.mxu0 0
    %2440 = vmatpush.bf16.xpose.msra.mxu0 0
    %2441 = vmatpush.bf16.xpose.msra.mxu0 %v2210
    %2442 = vmatmul.bf16.gmra.mxu0 %v1953
    %v2443 = vpop.f32.mrf.mxu0
    %v2444 = vadd.f32 %v2431, %v2443
    %v2445 = vpop.f32.mrf.mxu0
    %2446 = vdwg.mxu0
    %2447 = vmatpush.bf16.xpose.msra.mxu0 0
    %2448 = vmatpush.bf16.xpose.msra.mxu0 0
    %2449 = vmatpush.bf16.xpose.msra.mxu0 0
    %2450 = vmatpush.bf16.xpose.msra.mxu0 0
    %2451 = vmatpush.bf16.xpose.msra.mxu0 0
    %2452 = vmatpush.bf16.xpose.msra.mxu0 0
    %2453 = vmatpush.bf16.xpose.msra.mxu0 0
    %2454 = vmatpush.bf16.xpose.msra.mxu0 %v2211
    %2455 = vmatmul.bf16.gmra.mxu0 %v1954
    %v2456 = vpop.f32.mrf.mxu0
    %v2457 = vadd.f32 %v2444, %v2456
    %v2458 = vpop.f32.mrf.mxu0
    %2459 = vdwg.mxu0
    %2460 = vmatpush.bf16.xpose.msra.mxu0 0
    %2461 = vmatpush.bf16.xpose.msra.mxu0 0
    %2462 = vmatpush.bf16.xpose.msra.mxu0 0
    %2463 = vmatpush.bf16.xpose.msra.mxu0 0
    %2464 = vmatpush.bf16.xpose.msra.mxu0 0
    %2465 = vmatpush.bf16.xpose.msra.mxu0 0
    %2466 = vmatpush.bf16.xpose.msra.mxu0 0
    %2467 = vmatpush.bf16.xpose.msra.mxu0 %v2212
    %2468 = vmatmul.bf16.gmra.mxu0 %v1955
    %v2469 = vpop.f32.mrf.mxu0
    %v2470 = vadd.f32 %v2457, %v2469
    %v2471 = vpop.f32.mrf.mxu0
    %2472 = vdwg.mxu0
    %2473 = vmatpush.bf16.xpose.msra.mxu0 0
    %2474 = vmatpush.bf16.xpose.msra.mxu0 0
    %2475 = vmatpush.bf16.xpose.msra.mxu0 0
    %2476 = vmatpush.bf16.xpose.msra.mxu0 0
    %2477 = vmatpush.bf16.xpose.msra.mxu0 0
    %2478 = vmatpush.bf16.xpose.msra.mxu0 0
    %2479 = vmatpush.bf16.xpose.msra.mxu0 0
    %2480 = vmatpush.bf16.xpose.msra.mxu0 %v2213
    %2481 = vmatmul.bf16.gmra.mxu0 %v1956
    %v2482 = vpop.f32.mrf.mxu0
    %v2483 = vadd.f32 %v2470, %v2482
    %v2484 = vpop.f32.mrf.mxu0
    %2485 = vdwg.mxu0
    %2486 = vmatpush.bf16.xpose.msra.mxu0 0
    %2487 = vmatpush.bf16.xpose.msra.mxu0 0
    %2488 = vmatpush.bf16.xpose.msra.mxu0 0
    %2489 = vmatpush.bf16.xpose.msra.mxu0 0
    %2490 = vmatpush.bf16.xpose.msra.mxu0 0
    %2491 = vmatpush.bf16.xpose.msra.mxu0 0
    %2492 = vmatpush.bf16.xpose.msra.mxu0 0
    %2493 = vmatpush.bf16.xpose.msra.mxu0 %v2214
    %2494 = vmatmul.bf16.gmra.mxu0 %v1957
    %v2495 = vpop.f32.mrf.mxu0
    %v2496 = vadd.f32 %v2483, %v2495
    %v2497 = vpop.f32.mrf.mxu0
    %2498 = vdwg.mxu0
    %2499 = vmatpush.bf16.xpose.msra.mxu0 0
    %2500 = vmatpush.bf16.xpose.msra.mxu0 0
    %2501 = vmatpush.bf16.xpose.msra.mxu0 0
    %2502 = vmatpush.bf16.xpose.msra.mxu0 0
    %2503 = vmatpush.bf16.xpose.msra.mxu0 0
    %2504 = vmatpush.bf16.xpose.msra.mxu0 0
    %2505 = vmatpush.bf16.xpose.msra.mxu0 0
    %2506 = vmatpush.bf16.xpose.msra.mxu0 %v2215
    %2507 = vmatmul.bf16.gmra.mxu0 %v1958
    %v2508 = vpop.f32.mrf.mxu0
    %v2509 = vadd.f32 %v2496, %v2508
    %v2510 = vpop.f32.mrf.mxu0
    %2511 = vdwg.mxu0
    %2512 = vmatpush.bf16.xpose.msra.mxu0 0
    %2513 = vmatpush.bf16.xpose.msra.mxu0 0
    %2514 = vmatpush.bf16.xpose.msra.mxu0 0
    %2515 = vmatpush.bf16.xpose.msra.mxu0 0
    %2516 = vmatpush.bf16.xpose.msra.mxu0 0
    %2517 = vmatpush.bf16.xpose.msra.mxu0 0
    %2518 = vmatpush.bf16.xpose.msra.mxu0 0
    %2519 = vmatpush.bf16.xpose.msra.mxu0 %v2216
    %2520 = vmatmul.bf16.gmra.mxu0 %v1959
    %v2521 = vpop.f32.mrf.mxu0
    %v2522 = vadd.f32 %v2509, %v2521
    %v2523 = vpop.f32.mrf.mxu0
    %2524 = vdwg.mxu0
    %2525 = vmatpush.bf16.xpose.msra.mxu0 0
    %2526 = vmatpush.bf16.xpose.msra.mxu0 0
    %2527 = vmatpush.bf16.xpose.msra.mxu0 0
    %2528 = vmatpush.bf16.xpose.msra.mxu0 0
    %2529 = vmatpush.bf16.xpose.msra.mxu0 0
    %2530 = vmatpush.bf16.xpose.msra.mxu0 0
    %2531 = vmatpush.bf16.xpose.msra.mxu0 0
    %2532 = vmatpush.bf16.xpose.msra.mxu0 %v2217
    %2533 = vmatmul.bf16.gmra.mxu0 %v1960
    %v2534 = vpop.f32.mrf.mxu0
    %v2535 = vadd.f32 %v2522, %v2534
    %v2536 = vpop.f32.mrf.mxu0
    %2537 = vdwg.mxu0
    %2538 = vmatpush.bf16.xpose.msra.mxu0 0
    %2539 = vmatpush.bf16.xpose.msra.mxu0 0
    %2540 = vmatpush.bf16.xpose.msra.mxu0 0
    %2541 = vmatpush.bf16.xpose.msra.mxu0 0
    %2542 = vmatpush.bf16.xpose.msra.mxu0 0
    %2543 = vmatpush.bf16.xpose.msra.mxu0 0
    %2544 = vmatpush.bf16.xpose.msra.mxu0 0
    %2545 = vmatpush.bf16.xpose.msra.mxu0 %v2218
    %2546 = vmatmul.bf16.gmra.mxu0 %v1961
    %v2547 = vpop.f32.mrf.mxu0
    %v2548 = vadd.f32 %v2535, %v2547
    %v2549 = vpop.f32.mrf.mxu0
    %2550 = vdwg.mxu0
    %2551 = vmatpush.bf16.xpose.msra.mxu0 0
    %2552 = vmatpush.bf16.xpose.msra.mxu0 0
    %2553 = vmatpush.bf16.xpose.msra.mxu0 0
    %2554 = vmatpush.bf16.xpose.msra.mxu0 0
    %2555 = vmatpush.bf16.xpose.msra.mxu0 0
    %2556 = vmatpush.bf16.xpose.msra.mxu0 0
    %2557 = vmatpush.bf16.xpose.msra.mxu0 0
    %2558 = vmatpush.bf16.xpose.msra.mxu0 %v2219
    %2559 = vmatmul.bf16.gmra.mxu0 %v1962
    %v2560 = vpop.f32.mrf.mxu0
    %v2561 = vadd.f32 %v2548, %v2560
    %v2562 = vpop.f32.mrf.mxu0
    %2563 = vdwg.mxu0
    %2564 = vmatpush.bf16.xpose.msra.mxu0 0
    %2565 = vmatpush.bf16.xpose.msra.mxu0 0
    %2566 = vmatpush.bf16.xpose.msra.mxu0 0
    %2567 = vmatpush.bf16.xpose.msra.mxu0 0
    %2568 = vmatpush.bf16.xpose.msra.mxu0 0
    %2569 = vmatpush.bf16.xpose.msra.mxu0 0
    %2570 = vmatpush.bf16.xpose.msra.mxu0 0
    %2571 = vmatpush.bf16.xpose.msra.mxu0 %v2220
    %2572 = vmatmul.bf16.gmra.mxu0 %v1963
    %v2573 = vpop.f32.mrf.mxu0
    %v2574 = vadd.f32 %v2561, %v2573
    %v2575 = vpop.f32.mrf.mxu0
    %2576 = vdwg.mxu0
    %2577 = vmatpush.bf16.xpose.msra.mxu0 0
    %2578 = vmatpush.bf16.xpose.msra.mxu0 0
    %2579 = vmatpush.bf16.xpose.msra.mxu0 0
    %2580 = vmatpush.bf16.xpose.msra.mxu0 0
    %2581 = vmatpush.bf16.xpose.msra.mxu0 0
    %2582 = vmatpush.bf16.xpose.msra.mxu0 0
    %2583 = vmatpush.bf16.xpose.msra.mxu0 0
    %2584 = vmatpush.bf16.xpose.msra.mxu0 %v2221
    %2585 = vmatmul.bf16.gmra.mxu0 %v1964
    %v2586 = vpop.f32.mrf.mxu0
    %v2587 = vadd.f32 %v2574, %v2586
    %v2588 = vpop.f32.mrf.mxu0
    %2589 = vdwg.mxu0
    %2590 = vmatpush.bf16.xpose.msra.mxu0 0
    %2591 = vmatpush.bf16.xpose.msra.mxu0 0
    %2592 = vmatpush.bf16.xpose.msra.mxu0 0
    %2593 = vmatpush.bf16.xpose.msra.mxu0 0
    %2594 = vmatpush.bf16.xpose.msra.mxu0 0
    %2595 = vmatpush.bf16.xpose.msra.mxu0 0
    %2596 = vmatpush.bf16.xpose.msra.mxu0 0
    %2597 = vmatpush.bf16.xpose.msra.mxu0 %v2222
    %2598 = vmatmul.bf16.gmra.mxu0 %v1965
    %v2599 = vpop.f32.mrf.mxu0
    %v2600 = vadd.f32 %v2587, %v2599
    %v2601 = vpop.f32.mrf.mxu0
    %2602 = vdwg.mxu0
    %2603 = vmatpush.bf16.xpose.msra.mxu0 0
    %2604 = vmatpush.bf16.xpose.msra.mxu0 0
    %2605 = vmatpush.bf16.xpose.msra.mxu0 0
    %2606 = vmatpush.bf16.xpose.msra.mxu0 0
    %2607 = vmatpush.bf16.xpose.msra.mxu0 0
    %2608 = vmatpush.bf16.xpose.msra.mxu0 0
    %2609 = vmatpush.bf16.xpose.msra.mxu0 0
    %2610 = vmatpush.bf16.xpose.msra.mxu0 %v2223
    %2611 = vmatmul.bf16.gmra.mxu0 %v1966
    %v2612 = vpop.f32.mrf.mxu0
    %v2613 = vadd.f32 %v2600, %v2612
    %v2614 = vpop.f32.mrf.mxu0
    %2615 = vdwg.mxu0
    %2616 = vmatpush.bf16.xpose.msra.mxu0 0
    %2617 = vmatpush.bf16.xpose.msra.mxu0 0
    %2618 = vmatpush.bf16.xpose.msra.mxu0 0
    %2619 = vmatpush.bf16.xpose.msra.mxu0 0
    %2620 = vmatpush.bf16.xpose.msra.mxu0 0
    %2621 = vmatpush.bf16.xpose.msra.mxu0 0
    %2622 = vmatpush.bf16.xpose.msra.mxu0 0
    %2623 = vmatpush.bf16.xpose.msra.mxu0 %v2224
    %2624 = vmatmul.bf16.gmra.mxu0 %v1967
    %v2625 = vpop.f32.mrf.mxu0
    %v2626 = vadd.f32 %v2613, %v2625
    %v2627 = vpop.f32.mrf.mxu0
    %2628 = vdwg.mxu0
    %2629 = vmatpush.bf16.xpose.msra.mxu0 0
    %2630 = vmatpush.bf16.xpose.msra.mxu0 0
    %2631 = vmatpush.bf16.xpose.msra.mxu0 0
    %2632 = vmatpush.bf16.xpose.msra.mxu0 0
    %2633 = vmatpush.bf16.xpose.msra.mxu0 0
    %2634 = vmatpush.bf16.xpose.msra.mxu0 0
    %2635 = vmatpush.bf16.xpose.msra.mxu0 0
    %2636 = vmatpush.bf16.xpose.msra.mxu0 %v2225
    %2637 = vmatmul.bf16.gmra.mxu0 %v1968
    %v2638 = vpop.f32.mrf.mxu0
    %v2639 = vadd.f32 %v2626, %v2638
    %v2640 = vpop.f32.mrf.mxu0
    %2641 = vdwg.mxu0
    %2642 = vmatpush.bf16.xpose.msra.mxu0 0
    %2643 = vmatpush.bf16.xpose.msra.mxu0 0
    %2644 = vmatpush.bf16.xpose.msra.mxu0 0
    %2645 = vmatpush.bf16.xpose.msra.mxu0 0
    %2646 = vmatpush.bf16.xpose.msra.mxu0 0
    %2647 = vmatpush.bf16.xpose.msra.mxu0 0
    %2648 = vmatpush.bf16.xpose.msra.mxu0 0
    %2649 = vmatpush.bf16.xpose.msra.mxu0 %v2226
    %2650 = vmatmul.bf16.gmra.mxu0 %v1969
    %v2651 = vpop.f32.mrf.mxu0
    %v2652 = vadd.f32 %v2639, %v2651
    %v2653 = vpop.f32.mrf.mxu0
    %2654 = vdwg.mxu0
    %2655 = vmatpush.bf16.xpose.msra.mxu0 0
    %2656 = vmatpush.bf16.xpose.msra.mxu0 0
    %2657 = vmatpush.bf16.xpose.msra.mxu0 0
    %2658 = vmatpush.bf16.xpose.msra.mxu0 0
    %2659 = vmatpush.bf16.xpose.msra.mxu0 0
    %2660 = vmatpush.bf16.xpose.msra.mxu0 0
    %2661 = vmatpush.bf16.xpose.msra.mxu0 0
    %2662 = vmatpush.bf16.xpose.msra.mxu0 %v2227
    %2663 = vmatmul.bf16.gmra.mxu0 %v1970
    %v2664 = vpop.f32.mrf.mxu0
    %v2665 = vadd.f32 %v2652, %v2664
    %v2666 = vpop.f32.mrf.mxu0
    %2667 = vdwg.mxu0
    %2668 = vmatpush.bf16.xpose.msra.mxu0 0
    %2669 = vmatpush.bf16.xpose.msra.mxu0 0
    %2670 = vmatpush.bf16.xpose.msra.mxu0 0
    %2671 = vmatpush.bf16.xpose.msra.mxu0 0
    %2672 = vmatpush.bf16.xpose.msra.mxu0 0
    %2673 = vmatpush.bf16.xpose.msra.mxu0 0
    %2674 = vmatpush.bf16.xpose.msra.mxu0 0
    %2675 = vmatpush.bf16.xpose.msra.mxu0 %v2228
    %2676 = vmatmul.bf16.gmra.mxu0 %v1971
    %v2677 = vpop.f32.mrf.mxu0
    %v2678 = vadd.f32 %v2665, %v2677
    %v2679 = vpop.f32.mrf.mxu0
    %2680 = vdwg.mxu0
    %2681 = vmatpush.bf16.xpose.msra.mxu0 0
    %2682 = vmatpush.bf16.xpose.msra.mxu0 0
    %2683 = vmatpush.bf16.xpose.msra.mxu0 0
    %2684 = vmatpush.bf16.xpose.msra.mxu0 0
    %2685 = vmatpush.bf16.xpose.msra.mxu0 0
    %2686 = vmatpush.bf16.xpose.msra.mxu0 0
    %2687 = vmatpush.bf16.xpose.msra.mxu0 0
    %2688 = vmatpush.bf16.xpose.msra.mxu0 %v2229
    %2689 = vmatmul.bf16.gmra.mxu0 %v1972
    %v2690 = vpop.f32.mrf.mxu0
    %v2691 = vadd.f32 %v2678, %v2690
    %v2692 = vpop.f32.mrf.mxu0
    %2693 = vdwg.mxu0
    %2694 = vmatpush.bf16.xpose.msra.mxu0 0
    %2695 = vmatpush.bf16.xpose.msra.mxu0 0
    %2696 = vmatpush.bf16.xpose.msra.mxu0 0
    %2697 = vmatpush.bf16.xpose.msra.mxu0 0
    %2698 = vmatpush.bf16.xpose.msra.mxu0 0
    %2699 = vmatpush.bf16.xpose.msra.mxu0 0
    %2700 = vmatpush.bf16.xpose.msra.mxu0 0
    %2701 = vmatpush.bf16.xpose.msra.mxu0 %v2230
    %2702 = vmatmul.bf16.gmra.mxu0 %v1973
    %v2703 = vpop.f32.mrf.mxu0
    %v2704 = vadd.f32 %v2691, %v2703
    %v2705 = vpop.f32.mrf.mxu0
    %2706 = vdwg.mxu0
    %2707 = vmatpush.bf16.xpose.msra.mxu0 0
    %2708 = vmatpush.bf16.xpose.msra.mxu0 0
    %2709 = vmatpush.bf16.xpose.msra.mxu0 0
    %2710 = vmatpush.bf16.xpose.msra.mxu0 0
    %2711 = vmatpush.bf16.xpose.msra.mxu0 0
    %2712 = vmatpush.bf16.xpose.msra.mxu0 0
    %2713 = vmatpush.bf16.xpose.msra.mxu0 0
    %2714 = vmatpush.bf16.xpose.msra.mxu0 %v2231
    %2715 = vmatmul.bf16.gmra.mxu0 %v1974
    %v2716 = vpop.f32.mrf.mxu0
    %v2717 = vadd.f32 %v2704, %v2716
    %v2718 = vpop.f32.mrf.mxu0
    %2719 = vdwg.mxu0
    %2720 = vmatpush.bf16.xpose.msra.mxu0 0
    %2721 = vmatpush.bf16.xpose.msra.mxu0 0
    %2722 = vmatpush.bf16.xpose.msra.mxu0 0
    %2723 = vmatpush.bf16.xpose.msra.mxu0 0
    %2724 = vmatpush.bf16.xpose.msra.mxu0 0
    %2725 = vmatpush.bf16.xpose.msra.mxu0 0
    %2726 = vmatpush.bf16.xpose.msra.mxu0 0
    %2727 = vmatpush.bf16.xpose.msra.mxu0 %v2232
    %2728 = vmatmul.bf16.gmra.mxu0 %v1975
    %v2729 = vpop.f32.mrf.mxu0
    %v2730 = vadd.f32 %v2717, %v2729
    %v2731 = vpop.f32.mrf.mxu0
    %2732 = vdwg.mxu0
    %2733 = vmatpush.bf16.xpose.msra.mxu0 0
    %2734 = vmatpush.bf16.xpose.msra.mxu0 0
    %2735 = vmatpush.bf16.xpose.msra.mxu0 0
    %2736 = vmatpush.bf16.xpose.msra.mxu0 0
    %2737 = vmatpush.bf16.xpose.msra.mxu0 0
    %2738 = vmatpush.bf16.xpose.msra.mxu0 0
    %2739 = vmatpush.bf16.xpose.msra.mxu0 0
    %2740 = vmatpush.bf16.xpose.msra.mxu0 %v2233
    %2741 = vmatmul.bf16.gmra.mxu0 %v1976
    %v2742 = vpop.f32.mrf.mxu0
    %v2743 = vadd.f32 %v2730, %v2742
    %v2744 = vpop.f32.mrf.mxu0
    %2745 = vdwg.mxu0
    %2746 = vmatpush.bf16.xpose.msra.mxu0 0
    %2747 = vmatpush.bf16.xpose.msra.mxu0 0
    %2748 = vmatpush.bf16.xpose.msra.mxu0 0
    %2749 = vmatpush.bf16.xpose.msra.mxu0 0
    %2750 = vmatpush.bf16.xpose.msra.mxu0 0
    %2751 = vmatpush.bf16.xpose.msra.mxu0 0
    %2752 = vmatpush.bf16.xpose.msra.mxu0 0
    %2753 = vmatpush.bf16.xpose.msra.mxu0 %v2234
    %2754 = vmatmul.bf16.gmra.mxu0 %v1977
    %v2755 = vpop.f32.mrf.mxu0
    %v2756 = vadd.f32 %v2743, %v2755
    %v2757 = vpop.f32.mrf.mxu0
    %2758 = vdwg.mxu0
    %2759 = vmatpush.bf16.xpose.msra.mxu0 0
    %2760 = vmatpush.bf16.xpose.msra.mxu0 0
    %2761 = vmatpush.bf16.xpose.msra.mxu0 0
    %2762 = vmatpush.bf16.xpose.msra.mxu0 0
    %2763 = vmatpush.bf16.xpose.msra.mxu0 0
    %2764 = vmatpush.bf16.xpose.msra.mxu0 0
    %2765 = vmatpush.bf16.xpose.msra.mxu0 0
    %2766 = vmatpush.bf16.xpose.msra.mxu0 %v2235
    %2767 = vmatmul.bf16.gmra.mxu0 %v1978
    %v2768 = vpop.f32.mrf.mxu0
    %v2769 = vadd.f32 %v2756, %v2768
    %v2770 = vpop.f32.mrf.mxu0
    %2771 = vdwg.mxu0
    %2772 = vmatpush.bf16.xpose.msra.mxu0 0
    %2773 = vmatpush.bf16.xpose.msra.mxu0 0
    %2774 = vmatpush.bf16.xpose.msra.mxu0 0
    %2775 = vmatpush.bf16.xpose.msra.mxu0 0
    %2776 = vmatpush.bf16.xpose.msra.mxu0 0
    %2777 = vmatpush.bf16.xpose.msra.mxu0 0
    %2778 = vmatpush.bf16.xpose.msra.mxu0 0
    %2779 = vmatpush.bf16.xpose.msra.mxu0 %v2236
    %2780 = vmatmul.bf16.gmra.mxu0 %v1979
    %v2781 = vpop.f32.mrf.mxu0
    %v2782 = vadd.f32 %v2769, %v2781
    %v2783 = vpop.f32.mrf.mxu0
    %2784 = vdwg.mxu0
    %2785 = vmatpush.bf16.xpose.msra.mxu0 0
    %2786 = vmatpush.bf16.xpose.msra.mxu0 0
    %2787 = vmatpush.bf16.xpose.msra.mxu0 0
    %2788 = vmatpush.bf16.xpose.msra.mxu0 0
    %2789 = vmatpush.bf16.xpose.msra.mxu0 0
    %2790 = vmatpush.bf16.xpose.msra.mxu0 0
    %2791 = vmatpush.bf16.xpose.msra.mxu0 0
    %2792 = vmatpush.bf16.xpose.msra.mxu0 %v2237
    %2793 = vmatmul.bf16.gmra.mxu0 %v1980
    %v2794 = vpop.f32.mrf.mxu0
    %v2795 = vadd.f32 %v2782, %v2794
    %v2796 = vpop.f32.mrf.mxu0
    %2797 = vdwg.mxu0
    %2798 = vmatpush.bf16.xpose.msra.mxu0 0
    %2799 = vmatpush.bf16.xpose.msra.mxu0 0
    %2800 = vmatpush.bf16.xpose.msra.mxu0 0
    %2801 = vmatpush.bf16.xpose.msra.mxu0 0
    %2802 = vmatpush.bf16.xpose.msra.mxu0 0
    %2803 = vmatpush.bf16.xpose.msra.mxu0 0
    %2804 = vmatpush.bf16.xpose.msra.mxu0 0
    %2805 = vmatpush.bf16.xpose.msra.mxu0 %v2238
    %2806 = vmatmul.bf16.gmra.mxu0 %v1981
    %v2807 = vpop.f32.mrf.mxu0
    %v2808 = vadd.f32 %v2795, %v2807
    %v2809 = vpop.f32.mrf.mxu0
    %2810 = vdwg.mxu0
    %2811 = vmatpush.bf16.xpose.msra.mxu0 0
    %2812 = vmatpush.bf16.xpose.msra.mxu0 0
    %2813 = vmatpush.bf16.xpose.msra.mxu0 0
    %2814 = vmatpush.bf16.xpose.msra.mxu0 0
    %2815 = vmatpush.bf16.xpose.msra.mxu0 0
    %2816 = vmatpush.bf16.xpose.msra.mxu0 0
    %2817 = vmatpush.bf16.xpose.msra.mxu0 0
    %2818 = vmatpush.bf16.xpose.msra.mxu0 %v2239
    %2819 = vmatmul.bf16.gmra.mxu0 %v1982
    %v2820 = vpop.f32.mrf.mxu0
    %v2821 = vadd.f32 %v2808, %v2820
    %v2822 = vpop.f32.mrf.mxu0
    %2823 = vdwg.mxu0
    %2824 = vmatpush.bf16.xpose.msra.mxu0 0
    %2825 = vmatpush.bf16.xpose.msra.mxu0 0
    %2826 = vmatpush.bf16.xpose.msra.mxu0 0
    %2827 = vmatpush.bf16.xpose.msra.mxu0 0
    %2828 = vmatpush.bf16.xpose.msra.mxu0 0
    %2829 = vmatpush.bf16.xpose.msra.mxu0 0
    %2830 = vmatpush.bf16.xpose.msra.mxu0 0
    %2831 = vmatpush.bf16.xpose.msra.mxu0 %v2240
    %2832 = vmatmul.bf16.gmra.mxu0 %v1983
    %v2833 = vpop.f32.mrf.mxu0
    %v2834 = vadd.f32 %v2821, %v2833
    %v2835 = vpop.f32.mrf.mxu0
    %2836 = vdwg.mxu0
    %2837 = vmatpush.bf16.xpose.msra.mxu0 0
    %2838 = vmatpush.bf16.xpose.msra.mxu0 0
    %2839 = vmatpush.bf16.xpose.msra.mxu0 0
    %2840 = vmatpush.bf16.xpose.msra.mxu0 0
    %2841 = vmatpush.bf16.xpose.msra.mxu0 0
    %2842 = vmatpush.bf16.xpose.msra.mxu0 0
    %2843 = vmatpush.bf16.xpose.msra.mxu0 0
    %2844 = vmatpush.bf16.xpose.msra.mxu0 %v2241
    %2845 = vmatmul.bf16.gmra.mxu0 %v1984
    %v2846 = vpop.f32.mrf.mxu0
    %v2847 = vadd.f32 %v2834, %v2846
    %v2848 = vpop.f32.mrf.mxu0
    %2849 = vdwg.mxu0
    %2850 = vmatpush.bf16.xpose.msra.mxu0 0
    %2851 = vmatpush.bf16.xpose.msra.mxu0 0
    %2852 = vmatpush.bf16.xpose.msra.mxu0 0
    %2853 = vmatpush.bf16.xpose.msra.mxu0 0
    %2854 = vmatpush.bf16.xpose.msra.mxu0 0
    %2855 = vmatpush.bf16.xpose.msra.mxu0 0
    %2856 = vmatpush.bf16.xpose.msra.mxu0 0
    %2857 = vmatpush.bf16.xpose.msra.mxu0 %v2242
    %2858 = vmatmul.bf16.gmra.mxu0 %v1985
    %v2859 = vpop.f32.mrf.mxu0
    %v2860 = vadd.f32 %v2847, %v2859
    %v2861 = vpop.f32.mrf.mxu0
    %2862 = vdwg.mxu0
    %2863 = vmatpush.bf16.xpose.msra.mxu0 0
    %2864 = vmatpush.bf16.xpose.msra.mxu0 0
    %2865 = vmatpush.bf16.xpose.msra.mxu0 0
    %2866 = vmatpush.bf16.xpose.msra.mxu0 0
    %2867 = vmatpush.bf16.xpose.msra.mxu0 0
    %2868 = vmatpush.bf16.xpose.msra.mxu0 0
    %2869 = vmatpush.bf16.xpose.msra.mxu0 0
    %2870 = vmatpush.bf16.xpose.msra.mxu0 %v2243
    %2871 = vmatmul.bf16.gmra.mxu0 %v1986
    %v2872 = vpop.f32.mrf.mxu0
    %v2873 = vadd.f32 %v2860, %v2872
    %v2874 = vpop.f32.mrf.mxu0
    %2875 = vdwg.mxu0
    %2876 = vmatpush.bf16.xpose.msra.mxu0 0
    %2877 = vmatpush.bf16.xpose.msra.mxu0 0
    %2878 = vmatpush.bf16.xpose.msra.mxu0 0
    %2879 = vmatpush.bf16.xpose.msra.mxu0 0
    %2880 = vmatpush.bf16.xpose.msra.mxu0 0
    %2881 = vmatpush.bf16.xpose.msra.mxu0 0
    %2882 = vmatpush.bf16.xpose.msra.mxu0 0
    %2883 = vmatpush.bf16.xpose.msra.mxu0 %v2244
    %2884 = vmatmul.bf16.gmra.mxu0 %v1987
    %v2885 = vpop.f32.mrf.mxu0
    %v2886 = vadd.f32 %v2873, %v2885
    %v2887 = vpop.f32.mrf.mxu0
    %2888 = vdwg.mxu0
    %2889 = vmatpush.bf16.xpose.msra.mxu0 0
    %2890 = vmatpush.bf16.xpose.msra.mxu0 0
    %2891 = vmatpush.bf16.xpose.msra.mxu0 0
    %2892 = vmatpush.bf16.xpose.msra.mxu0 0
    %2893 = vmatpush.bf16.xpose.msra.mxu0 0
    %2894 = vmatpush.bf16.xpose.msra.mxu0 0
    %2895 = vmatpush.bf16.xpose.msra.mxu0 0
    %2896 = vmatpush.bf16.xpose.msra.mxu0 %v2245
    %2897 = vmatmul.bf16.gmra.mxu0 %v1988
    %v2898 = vpop.f32.mrf.mxu0
    %v2899 = vadd.f32 %v2886, %v2898
    %v2900 = vpop.f32.mrf.mxu0
    %2901 = vdwg.mxu0
    %2902 = vmatpush.bf16.xpose.msra.mxu0 0
    %2903 = vmatpush.bf16.xpose.msra.mxu0 0
    %2904 = vmatpush.bf16.xpose.msra.mxu0 0
    %2905 = vmatpush.bf16.xpose.msra.mxu0 0
    %2906 = vmatpush.bf16.xpose.msra.mxu0 0
    %2907 = vmatpush.bf16.xpose.msra.mxu0 0
    %2908 = vmatpush.bf16.xpose.msra.mxu0 0
    %2909 = vmatpush.bf16.xpose.msra.mxu0 %v2246
    %2910 = vmatmul.bf16.gmra.mxu0 %v1989
    %v2911 = vpop.f32.mrf.mxu0
    %v2912 = vadd.f32 %v2899, %v2911
    %v2913 = vpop.f32.mrf.mxu0
    %2914 = vdwg.mxu0
    %2915 = vmatpush.bf16.xpose.msra.mxu0 0
    %2916 = vmatpush.bf16.xpose.msra.mxu0 0
    %2917 = vmatpush.bf16.xpose.msra.mxu0 0
    %2918 = vmatpush.bf16.xpose.msra.mxu0 0
    %2919 = vmatpush.bf16.xpose.msra.mxu0 0
    %2920 = vmatpush.bf16.xpose.msra.mxu0 0
    %2921 = vmatpush.bf16.xpose.msra.mxu0 0
    %2922 = vmatpush.bf16.xpose.msra.mxu0 %v2247
    %2923 = vmatmul.bf16.gmra.mxu0 %v1990
    %v2924 = vpop.f32.mrf.mxu0
    %v2925 = vadd.f32 %v2912, %v2924
    %v2926 = vpop.f32.mrf.mxu0
    %2927 = vdwg.mxu0
    %2928 = vmatpush.bf16.xpose.msra.mxu0 0
    %2929 = vmatpush.bf16.xpose.msra.mxu0 0
    %2930 = vmatpush.bf16.xpose.msra.mxu0 0
    %2931 = vmatpush.bf16.xpose.msra.mxu0 0
    %2932 = vmatpush.bf16.xpose.msra.mxu0 0
    %2933 = vmatpush.bf16.xpose.msra.mxu0 0
    %2934 = vmatpush.bf16.xpose.msra.mxu0 0
    %2935 = vmatpush.bf16.xpose.msra.mxu0 %v2248
    %2936 = vmatmul.bf16.gmra.mxu0 %v1991
    %v2937 = vpop.f32.mrf.mxu0
    %v2938 = vadd.f32 %v2925, %v2937
    %v2939 = vpop.f32.mrf.mxu0
    %2940 = vdwg.mxu0
    %2941 = vmatpush.bf16.xpose.msra.mxu0 0
    %2942 = vmatpush.bf16.xpose.msra.mxu0 0
    %2943 = vmatpush.bf16.xpose.msra.mxu0 0
    %2944 = vmatpush.bf16.xpose.msra.mxu0 0
    %2945 = vmatpush.bf16.xpose.msra.mxu0 0
    %2946 = vmatpush.bf16.xpose.msra.mxu0 0
    %2947 = vmatpush.bf16.xpose.msra.mxu0 0
    %2948 = vmatpush.bf16.xpose.msra.mxu0 %v2249
    %2949 = vmatmul.bf16.gmra.mxu0 %v1992
    %v2950 = vpop.f32.mrf.mxu0
    %v2951 = vadd.f32 %v2938, %v2950
    %v2952 = vpop.f32.mrf.mxu0
    %2953 = vdwg.mxu0
    %2954 = vmatpush.bf16.xpose.msra.mxu0 0
    %2955 = vmatpush.bf16.xpose.msra.mxu0 0
    %2956 = vmatpush.bf16.xpose.msra.mxu0 0
    %2957 = vmatpush.bf16.xpose.msra.mxu0 0
    %2958 = vmatpush.bf16.xpose.msra.mxu0 0
    %2959 = vmatpush.bf16.xpose.msra.mxu0 0
    %2960 = vmatpush.bf16.xpose.msra.mxu0 0
    %2961 = vmatpush.bf16.xpose.msra.mxu0 %v2250
    %2962 = vmatmul.bf16.gmra.mxu0 %v1993
    %v2963 = vpop.f32.mrf.mxu0
    %v2964 = vadd.f32 %v2951, %v2963
    %v2965 = vpop.f32.mrf.mxu0
    %2966 = vdwg.mxu0
    %2967 = vmatpush.bf16.xpose.msra.mxu0 0
    %2968 = vmatpush.bf16.xpose.msra.mxu0 0
    %2969 = vmatpush.bf16.xpose.msra.mxu0 0
    %2970 = vmatpush.bf16.xpose.msra.mxu0 0
    %2971 = vmatpush.bf16.xpose.msra.mxu0 0
    %2972 = vmatpush.bf16.xpose.msra.mxu0 0
    %2973 = vmatpush.bf16.xpose.msra.mxu0 0
    %2974 = vmatpush.bf16.xpose.msra.mxu0 %v2251
    %2975 = vmatmul.bf16.gmra.mxu0 %v1994
    %v2976 = vpop.f32.mrf.mxu0
    %v2977 = vadd.f32 %v2964, %v2976
    %v2978 = vpop.f32.mrf.mxu0
    %2979 = vdwg.mxu0
    %2980 = vmatpush.bf16.xpose.msra.mxu0 0
    %2981 = vmatpush.bf16.xpose.msra.mxu0 0
    %2982 = vmatpush.bf16.xpose.msra.mxu0 0
    %2983 = vmatpush.bf16.xpose.msra.mxu0 0
    %2984 = vmatpush.bf16.xpose.msra.mxu0 0
    %2985 = vmatpush.bf16.xpose.msra.mxu0 0
    %2986 = vmatpush.bf16.xpose.msra.mxu0 0
    %2987 = vmatpush.bf16.xpose.msra.mxu0 %v2252
    %2988 = vmatmul.bf16.gmra.mxu0 %v1995
    %v2989 = vpop.f32.mrf.mxu0
    %v2990 = vadd.f32 %v2977, %v2989
    %v2991 = vpop.f32.mrf.mxu0
    %2992 = vdwg.mxu0
    %2993 = vmatpush.bf16.xpose.msra.mxu0 0
    %2994 = vmatpush.bf16.xpose.msra.mxu0 0
    %2995 = vmatpush.bf16.xpose.msra.mxu0 0
    %2996 = vmatpush.bf16.xpose.msra.mxu0 0
    %2997 = vmatpush.bf16.xpose.msra.mxu0 0
    %2998 = vmatpush.bf16.xpose.msra.mxu0 0
    %2999 = vmatpush.bf16.xpose.msra.mxu0 0
    %3000 = vmatpush.bf16.xpose.msra.mxu0 %v2253
    %3001 = vmatmul.bf16.gmra.mxu0 %v1996
    %v3002 = vpop.f32.mrf.mxu0
    %v3003 = vadd.f32 %v2990, %v3002
    %v3004 = vpop.f32.mrf.mxu0
    %3005 = vdwg.mxu0
    %3006 = vmatpush.bf16.xpose.msra.mxu0 0
    %3007 = vmatpush.bf16.xpose.msra.mxu0 0
    %3008 = vmatpush.bf16.xpose.msra.mxu0 0
    %3009 = vmatpush.bf16.xpose.msra.mxu0 0
    %3010 = vmatpush.bf16.xpose.msra.mxu0 0
    %3011 = vmatpush.bf16.xpose.msra.mxu0 0
    %3012 = vmatpush.bf16.xpose.msra.mxu0 0
    %3013 = vmatpush.bf16.xpose.msra.mxu0 %v2254
    %3014 = vmatmul.bf16.gmra.mxu0 %v1997
    %v3015 = vpop.f32.mrf.mxu0
    %v3016 = vadd.f32 %v3003, %v3015
    %v3017 = vpop.f32.mrf.mxu0
    %3018 = vdwg.mxu0
    %3019 = vmatpush.bf16.xpose.msra.mxu0 0
    %3020 = vmatpush.bf16.xpose.msra.mxu0 0
    %3021 = vmatpush.bf16.xpose.msra.mxu0 0
    %3022 = vmatpush.bf16.xpose.msra.mxu0 0
    %3023 = vmatpush.bf16.xpose.msra.mxu0 0
    %3024 = vmatpush.bf16.xpose.msra.mxu0 0
    %3025 = vmatpush.bf16.xpose.msra.mxu0 0
    %3026 = vmatpush.bf16.xpose.msra.mxu0 %v2255
    %3027 = vmatmul.bf16.gmra.mxu0 %v1998
    %v3028 = vpop.f32.mrf.mxu0
    %v3029 = vadd.f32 %v3016, %v3028
    %v3030 = vpop.f32.mrf.mxu0
    %3031 = vdwg.mxu0
    %3032 = vmatpush.bf16.xpose.msra.mxu0 0
    %3033 = vmatpush.bf16.xpose.msra.mxu0 0
    %3034 = vmatpush.bf16.xpose.msra.mxu0 0
    %3035 = vmatpush.bf16.xpose.msra.mxu0 0
    %3036 = vmatpush.bf16.xpose.msra.mxu0 0
    %3037 = vmatpush.bf16.xpose.msra.mxu0 0
    %3038 = vmatpush.bf16.xpose.msra.mxu0 0
    %3039 = vmatpush.bf16.xpose.msra.mxu0 %v2256
    %3040 = vmatmul.bf16.gmra.mxu0 %v1999
    %v3041 = vpop.f32.mrf.mxu0
    %v3042 = vadd.f32 %v3029, %v3041
    %v3043 = vpop.f32.mrf.mxu0
    %3044 = vdwg.mxu0
    %3045 = vmatpush.bf16.xpose.msra.mxu0 0
    %3046 = vmatpush.bf16.xpose.msra.mxu0 0
    %3047 = vmatpush.bf16.xpose.msra.mxu0 0
    %3048 = vmatpush.bf16.xpose.msra.mxu0 0
    %3049 = vmatpush.bf16.xpose.msra.mxu0 0
    %3050 = vmatpush.bf16.xpose.msra.mxu0 0
    %3051 = vmatpush.bf16.xpose.msra.mxu0 0
    %3052 = vmatpush.bf16.xpose.msra.mxu0 %v2257
    %3053 = vmatmul.bf16.gmra.mxu0 %v2000
    %v3054 = vpop.f32.mrf.mxu0
    %v3055 = vadd.f32 %v3042, %v3054
    %v3056 = vpop.f32.mrf.mxu0
    %3057 = vdwg.mxu0
    %3058 = vmatpush.bf16.xpose.msra.mxu0 0
    %3059 = vmatpush.bf16.xpose.msra.mxu0 0
    %3060 = vmatpush.bf16.xpose.msra.mxu0 0
    %3061 = vmatpush.bf16.xpose.msra.mxu0 0
    %3062 = vmatpush.bf16.xpose.msra.mxu0 0
    %3063 = vmatpush.bf16.xpose.msra.mxu0 0
    %3064 = vmatpush.bf16.xpose.msra.mxu0 0
    %3065 = vmatpush.bf16.xpose.msra.mxu0 %v2258
    %3066 = vmatmul.bf16.gmra.mxu0 %v2001
    %v3067 = vpop.f32.mrf.mxu0
    %v3068 = vadd.f32 %v3055, %v3067
    %v3069 = vpop.f32.mrf.mxu0
    %3070 = vdwg.mxu0
    %3071 = vmatpush.bf16.xpose.msra.mxu0 0
    %3072 = vmatpush.bf16.xpose.msra.mxu0 0
    %3073 = vmatpush.bf16.xpose.msra.mxu0 0
    %3074 = vmatpush.bf16.xpose.msra.mxu0 0
    %3075 = vmatpush.bf16.xpose.msra.mxu0 0
    %3076 = vmatpush.bf16.xpose.msra.mxu0 0
    %3077 = vmatpush.bf16.xpose.msra.mxu0 0
    %3078 = vmatpush.bf16.xpose.msra.mxu0 %v2259
    %3079 = vmatmul.bf16.gmra.mxu0 %v2002
    %v3080 = vpop.f32.mrf.mxu0
    %v3081 = vadd.f32 %v3068, %v3080
    %v3082 = vpop.f32.mrf.mxu0
    %3083 = vdwg.mxu0
    %3084 = vmatpush.bf16.xpose.msra.mxu0 0
    %3085 = vmatpush.bf16.xpose.msra.mxu0 0
    %3086 = vmatpush.bf16.xpose.msra.mxu0 0
    %3087 = vmatpush.bf16.xpose.msra.mxu0 0
    %3088 = vmatpush.bf16.xpose.msra.mxu0 0
    %3089 = vmatpush.bf16.xpose.msra.mxu0 0
    %3090 = vmatpush.bf16.xpose.msra.mxu0 0
    %3091 = vmatpush.bf16.xpose.msra.mxu0 %v2260
    %3092 = vmatmul.bf16.gmra.mxu0 %v2003
    %v3093 = vpop.f32.mrf.mxu0
    %v3094 = vadd.f32 %v3081, %v3093
    %v3095 = vpop.f32.mrf.mxu0
    %3096 = vdwg.mxu0
    %3097 = vmatpush.bf16.xpose.msra.mxu0 0
    %3098 = vmatpush.bf16.xpose.msra.mxu0 0
    %3099 = vmatpush.bf16.xpose.msra.mxu0 0
    %3100 = vmatpush.bf16.xpose.msra.mxu0 0
    %3101 = vmatpush.bf16.xpose.msra.mxu0 0
    %3102 = vmatpush.bf16.xpose.msra.mxu0 0
    %3103 = vmatpush.bf16.xpose.msra.mxu0 0
    %3104 = vmatpush.bf16.xpose.msra.mxu0 %v2261
    %3105 = vmatmul.bf16.gmra.mxu0 %v2004
    %v3106 = vpop.f32.mrf.mxu0
    %v3107 = vadd.f32 %v3094, %v3106
    %v3108 = vpop.f32.mrf.mxu0
    %3109 = vdwg.mxu0
    %3110 = vmatpush.bf16.xpose.msra.mxu0 0
    %3111 = vmatpush.bf16.xpose.msra.mxu0 0
    %3112 = vmatpush.bf16.xpose.msra.mxu0 0
    %3113 = vmatpush.bf16.xpose.msra.mxu0 0
    %3114 = vmatpush.bf16.xpose.msra.mxu0 0
    %3115 = vmatpush.bf16.xpose.msra.mxu0 0
    %3116 = vmatpush.bf16.xpose.msra.mxu0 0
    %3117 = vmatpush.bf16.xpose.msra.mxu0 %v2262
    %3118 = vmatmul.bf16.gmra.mxu0 %v2005
    %v3119 = vpop.f32.mrf.mxu0
    %v3120 = vadd.f32 %v3107, %v3119
    %v3121 = vpop.f32.mrf.mxu0
    %3122 = vdwg.mxu0
    %3123 = vmatpush.bf16.xpose.msra.mxu0 0
    %3124 = vmatpush.bf16.xpose.msra.mxu0 0
    %3125 = vmatpush.bf16.xpose.msra.mxu0 0
    %3126 = vmatpush.bf16.xpose.msra.mxu0 0
    %3127 = vmatpush.bf16.xpose.msra.mxu0 0
    %3128 = vmatpush.bf16.xpose.msra.mxu0 0
    %3129 = vmatpush.bf16.xpose.msra.mxu0 0
    %3130 = vmatpush.bf16.xpose.msra.mxu0 %v2263
    %3131 = vmatmul.bf16.gmra.mxu0 %v2006
    %v3132 = vpop.f32.mrf.mxu0
    %v3133 = vadd.f32 %v3120, %v3132
    %v3134 = vpop.f32.mrf.mxu0
    %3135 = vdwg.mxu0
    %3136 = vmatpush.bf16.xpose.msra.mxu0 0
    %3137 = vmatpush.bf16.xpose.msra.mxu0 0
    %3138 = vmatpush.bf16.xpose.msra.mxu0 0
    %3139 = vmatpush.bf16.xpose.msra.mxu0 0
    %3140 = vmatpush.bf16.xpose.msra.mxu0 0
    %3141 = vmatpush.bf16.xpose.msra.mxu0 0
    %3142 = vmatpush.bf16.xpose.msra.mxu0 0
    %3143 = vmatpush.bf16.xpose.msra.mxu0 %v2264
    %3144 = vmatmul.bf16.gmra.mxu0 %v2007
    %v3145 = vpop.f32.mrf.mxu0
    %v3146 = vadd.f32 %v3133, %v3145
    %v3147 = vpop.f32.mrf.mxu0
    %3148 = vdwg.mxu0
    %3149 = vmatpush.bf16.xpose.msra.mxu0 0
    %3150 = vmatpush.bf16.xpose.msra.mxu0 0
    %3151 = vmatpush.bf16.xpose.msra.mxu0 0
    %3152 = vmatpush.bf16.xpose.msra.mxu0 0
    %3153 = vmatpush.bf16.xpose.msra.mxu0 0
    %3154 = vmatpush.bf16.xpose.msra.mxu0 0
    %3155 = vmatpush.bf16.xpose.msra.mxu0 0
    %3156 = vmatpush.bf16.xpose.msra.mxu0 %v2265
    %3157 = vmatmul.bf16.gmra.mxu0 %v2008
    %v3158 = vpop.f32.mrf.mxu0
    %v3159 = vadd.f32 %v3146, %v3158
    %v3160 = vpop.f32.mrf.mxu0
    %3161 = vdwg.mxu0
    %v3162 = vtanh.pop %v3159
    %vm3163 = vcmask 130048
    %3164 = vst.msk [vmem:[#allocation8] sm:$0xff] %vm3163, %v3162
    // Predicated region
    $region26: #{fwd.1} parent=1 // pred_check
      _
    $region27: #{fwd.1} parent=1 // pred_check_branch
      %3166 = sbr.rel (0) target = $region29
    $region28: #{fwd.1} parent=1 // pred_region
      %3168 = vsyncadd [#allocation4], 0
      %s3170 = sshll.u32 [#allocation8], 4
      %s3171 = int_to_ptr.vmem [resolvable:$true] %s3170
      %s3172 = sshll.u32 %s3, 4
      %s3173 = int_to_ptr.hbm [resolvable:$true] %s3172
      %3175 = dma.vmem_to_hbm [thread:$0]  %s3171, 128, %s3173, [#allocation4]
    $region29: #{fwd.1} parent=1 // pred_fallthru
      _
    // Predicated region
    $region30: #{fwd.1} parent=1 // pred_check
      _
    $region31: #{fwd.1} parent=1 // pred_check_branch
      %3177 = sbr.rel (0) target = $region33
    $region32: #{fwd.1} parent=1 // pred_region
      %3179 = dma.done [#allocation4], 128
    $region33: #{fwd.1} parent=1 // pred_fallthru
      _
    %3180 = vsyncpa [#allocation3], 1
    %3181 = vsyncpa [#allocation6], 1
    %3182 = vsyncpa [#allocation4], 1

</llo_original>
